<compile_context>
chip_gen: v5e
topology: v5e:2x2
jax: 0.10.0
libtpu: 0.0.40
codegen_flags: <defaults>
</compile_context>

<pallas_src>
import jax
import jax.numpy as jnp
from jax.experimental import pallas as pl
from jax.experimental.pallas import tpu as pltpu


# --------------------------------------------------------------------- fused BiLSTM kernel
def _make_fused_kernel(T, B, H, num_layers, offsets):
    """offsets: per layer (wih_off, d_in, whh_off, b_off) static rows into the packed
    bf16 weight array of width 8H (interleaved gate columns)."""
    H2, H8 = 2 * H, 8 * H

    def kernel(lens_ref, x_ref, w_ref, fc_ref, o_ref, y_ref):
        # lens_ref: (B,1) f32 | x_ref: (T*B,E) bf16 | w_ref: (R,8H) bf16
        # fc_ref: (2H+1,C) f32 | o_ref: (B,C) f32 | y_ref: (T*B,2H) bf16 VMEM scratch
        lens = lens_ref[...]                                            # (B, 1)
        masks = [(lens > float(t)).astype(jnp.float32) for t in range(T)]

        lane8 = jax.lax.broadcasted_iota(jnp.int32, (B, H8), 1)
        # g-gate lanes (g_f and g_b are adjacent H-blocks in the interleaved layout)
        is_g = (lane8 >= 4 * H) & (lane8 < 6 * H)
        # forward-direction lanes = even H-blocks
        if (H & (H - 1)) == 0:
            sel_fwd = (lane8 & H) == 0
        else:
            sel_fwd = (lane8 % (2 * H)) < H
        lane2 = jax.lax.broadcasted_iota(jnp.int32, (B, H2), 1)
        fwd_half = lane2 < H                                            # (B, 2H)

        def run_layer(x_bf16, wih_off, d_in, whh_off, b_off, store_outputs):
            wih = w_ref[wih_off:wih_off + d_in, :]                      # (d_in, 8H) bf16
            whh = w_ref[whh_off:whh_off + H2, :]                        # (2H,   8H) bf16
            bias = w_ref[b_off:b_off + 1, :].astype(jnp.float32)        # (1,    8H)
            # Hoisted fused input projection for BOTH directions, all timesteps.
            gx = jnp.dot(x_bf16, wih,
                         preferred_element_type=jnp.float32) + bias     # (T*B, 8H)

            h = jnp.zeros((B, H2), jnp.float32)                         # [h_f | h_b]
            c = jnp.zeros((B, H2), jnp.float32)
            y_first = y_last = None
            for s in range(T):                          # static, fully unrolled
                t_f, t_b = s, T - 1 - s                 # fwd processes t_f, bwd t_b
                gates_x = jnp.where(sel_fwd,
                                    gx[t_f * B:(t_f + 1) * B, :],
                                    gx[t_b * B:(t_b + 1) * B, :])       # (B, 8H)
                gates = gates_x + jnp.dot(h.astype(jnp.bfloat16), whh,
                                          preferred_element_type=jnp.float32)
                # single EUP pass: sigmoid(x) = 0.5*tanh(0.5*x) + 0.5
                pre = jnp.where(is_g, gates, 0.5 * gates)
                th = jnp.tanh(pre)
                act = jnp.where(is_g, th, 0.5 * th + 0.5)
                i2 = act[:, 0 * H2:1 * H2]              # [i_f | i_b]  (B, 2H)
                f2 = act[:, 1 * H2:2 * H2]
                g2 = act[:, 2 * H2:3 * H2]
                o2 = act[:, 3 * H2:4 * H2]
                c_new = f2 * c + i2 * g2
                h_new = o2 * jnp.tanh(c_new)
                # packed-sequence masking (per-direction timestep validity)
                m2 = jnp.where(fwd_half, masks[t_f], masks[t_b])        # (B, 2H)
                h = m2 * h_new + (1.0 - m2) * h
                c = m2 * c_new + (1.0 - m2) * c
                y_step = m2 * h_new                     # padded outputs are exactly 0
                if store_outputs:                       # only layers that feed another layer
                    y_ref[t_f * B:(t_f + 1) * B, 0:H] = \
                        y_step[:, 0:H].astype(jnp.bfloat16)
                    y_ref[t_b * B:(t_b + 1) * B, H:H2] = \
                        y_step[:, H:H2].astype(jnp.bfloat16)
                if s == 0:
                    y_first = y_step                    # bwd half = out[:, T-1, bwd]
                if s == T - 1:
                    y_last = y_step                     # fwd half = out[:, T-1, fwd]
            return y_first, y_last

        cur = x_ref[...]                                # (T*B, E) bf16
        y_first = y_last = None
        for layer in range(num_layers):
            store = layer + 1 < num_layers
            # TODO(synk): inter-layer LSTM dropout is identity (eval mode).
            y_first, y_last = run_layer(cur, *offsets[layer], store)
            if store:
                cur = y_ref[...]                        # (T*B, 2H) bf16 from scratch

        # out[:, -1]: fwd half from the last step, bwd half from the first step.
        last = jnp.where(fwd_half, y_last, y_first)     # (B, 2H) f32
        last = jnp.maximum(last, 0.0)                   # relu
        o_ref[...] = jnp.dot(last, fc_ref[0:H2, :],
                             preferred_element_type=jnp.float32) + fc_ref[H2:H2 + 1, :]

    return kernel


# --------------------------------------------------------------------------- params / glue
def init_params(key, num_classes, word_vocab_size, pos_size, drug_type_size,
                num_lstm_layers, e1, e2, e3, hidden):
    keys = jax.random.split(key, 8)

    def emb(k, n, d):
        t = jax.random.normal(k, (n, d), jnp.float32) * 0.1
        return t.at[0].set(0.0)                               # padding_idx=0

    params = {
        "emb1": emb(keys[0], word_vocab_size, e1),
        "emb2": emb(keys[1], pos_size, e2),
        "emb3": emb(keys[2], drug_type_size, e3),
    }
    emb_dim = e1 + e2 + e3
    scale = float(1.0 / (hidden ** 0.5))
    lstm_keys = jax.random.split(keys[3], num_lstm_layers * 2 * 3)
    ki = 0
    lstm = []
    for layer in range(num_lstm_layers):
        d_in = emb_dim if layer == 0 else 2 * hidden
        dirs = []
        for _ in range(2):                                    # forward, backward
            w_ih = jax.random.uniform(lstm_keys[ki], (d_in, 4 * hidden),
                                      jnp.float32, -scale, scale); ki += 1
            w_hh = jax.random.uniform(lstm_keys[ki], (hidden, 4 * hidden),
                                      jnp.float32, -scale, scale); ki += 1
            # NOTE: b_ih + b_hh combined into one bias (init distribution differs slightly
            # from PyTorch's sum of two uniforms; initialization-only).
            b = jax.random.uniform(lstm_keys[ki], (1, 4 * hidden),
                                   jnp.float32, -scale, scale); ki += 1
            dirs.append((w_ih, w_hh, b))
        lstm.append(dirs)
    params["lstm"] = lstm
    params["fc_w"] = jax.random.uniform(keys[4], (2 * hidden, num_classes),
                                        jnp.float32, -0.1, 0.1)
    params["fc_b"] = jax.random.uniform(keys[5], (1, num_classes),
                                        jnp.float32, -0.1, 0.1)
    return params


def pack_params(params, hidden):
    """Pack all LSTM weights/biases into ONE bf16 (rows, 8H) array with interleaved gate
    columns [i_f,i_b,f_f,f_b,g_f,g_b,o_f,o_b] and block-diagonal recurrent weights, plus
    one f32 (2H+1, C) array for the classifier. Sections are 16-row aligned (bf16 tile)."""
    H = hidden
    H8 = 8 * H

    def interleave(wf, wb):                               # (R,4H),(R,4H) -> (R,8H)
        R = wf.shape[0]
        return jnp.stack([wf.reshape(R, 4, H), wb.reshape(R, 4, H)],
                         axis=2).reshape(R, H8)

    sections, offsets = [], []
    row = 0

    def append(block):
        nonlocal row
        off = row
        r = int(block.shape[0])
        pad = (-r) % 16                                   # bf16 sublane tile = 16 rows
        if pad:
            block = jnp.concatenate(
                [block, jnp.zeros((pad, block.shape[1]), block.dtype)], axis=0)
        sections.append(block.astype(jnp.bfloat16))
        row += r + pad
        return off

    for (wf_ih, wf_hh, bf), (wb_ih, wb_hh, bb) in params["lstm"]:
        d_in = int(wf_ih.shape[0])
        wih_off = append(interleave(wf_ih, wb_ih))                        # (d_in, 8H)
        whh_off = append(jnp.concatenate(                                 # block-diag (2H,8H)
            [interleave(wf_hh, jnp.zeros_like(wf_hh)),
             interleave(jnp.zeros_like(wb_hh), wb_hh)], axis=0))
        b_off = append(interleave(bf, bb))                                # (1, 8H)
        offsets.append((wih_off, d_in, whh_off, b_off))

    wpack = jnp.concatenate(sections, axis=0)                             # bf16
    fc_pack = jnp.concatenate([params["fc_w"], params["fc_b"]],
                              axis=0).astype(jnp.float32)                 # (2H+1, C)
    return wpack, fc_pack, tuple(offsets)


def cnn_bilstm_forward(params, wpack, fc_pack, offsets, xw, xp, xdt, data_len, hidden):
    B, S = xw.shape
    T = S        # static padded length (== max(data_len) under normal batching)

    # Embedding lookups (gather) + concat kept in JAX glue; dropout = identity (eval).
    embW = jnp.take(params["emb1"], xw, axis=0)
    embP = jnp.take(params["emb2"], xp, axis=0)
    embDT = jnp.take(params["emb3"], xdt, axis=0)
    embs = jnp.concatenate([embW, embP, embDT], axis=-1)      # (B, T, E)
    E = embs.shape[-1]

    # time-major flatten: row t*B + b  <->  (timestep t, batch b); bf16 matmul operand.
    x2d = jnp.transpose(embs, (1, 0, 2)).reshape(T * B, E).astype(jnp.bfloat16)
    lens_f = jnp.asarray(data_len, jnp.float32).reshape(B, 1)

    C = fc_pack.shape[1]
    kernel = _make_fused_kernel(T, B, hidden, len(offsets), offsets)
    return pl.pallas_call(
        kernel,
        out_shape=jax.ShapeDtypeStruct((B, C), jnp.float32),
        scratch_shapes=[pltpu.VMEM((T * B, 2 * hidden), jnp.bfloat16)],
    )(lens_f, x2d, wpack, fc_pack)


# ------------------------------------------------------------------------------------ main
if __name__ == "__main__":
    num_classes = 5
    word_vocab_size = 50
    pos_size = 12
    drug_type_size = 7
    num_lstm_layers = 2
    e1, e2, e3 = 16, 8, 8      # embedding_dim1/2/3 -> embedding_dim = 32
    hidden = 32                # hidden_dim; bidirectional -> classifier sees 64
    B, S = 2, 8                # NOTE: batch >= 8 per call would better fill sublanes/MXU-M

    key = jax.random.PRNGKey(0)
    kx, kp, kd, kparam = jax.random.split(key, 4)
    xw = jax.random.randint(kx, (B, S), 1, word_vocab_size, dtype=jnp.int32)
    xp = jax.random.randint(kp, (B, S), 1, pos_size, dtype=jnp.int32)
    xdt = jax.random.randint(kd, (B, S), 1, drug_type_size, dtype=jnp.int32)

    data_len = [8, 5]          # S == max(data_len), as produced by normal batching
    lens = jnp.asarray(data_len, jnp.int32)
    pad_mask = jnp.arange(S)[None, :] < lens[:, None]
    xw = jnp.where(pad_mask, xw, 0)    # padded positions use padding_idx=0
    xp = jnp.where(pad_mask, xp, 0)
    xdt = jnp.where(pad_mask, xdt, 0)

    params = init_params(kparam, num_classes, word_vocab_size, pos_size,
                         drug_type_size, num_lstm_layers, e1, e2, e3, hidden)
    wpack, fc_pack, offsets = pack_params(params, hidden)

    out = cnn_bilstm_forward(params, wpack, fc_pack, offsets,
                             xw, xp, xdt, data_len, hidden)
    out = jax.block_until_ready(out)

    assert out.shape == (B, num_classes), out.shape
    assert bool(jnp.all(jnp.isfinite(out)))
    print("KERNEL_OK")
</pallas_src>

<mosaic_0001>
module attributes {stable_mosaic.version = 11 : i64} {
  func.func @kernel(%arg0: memref<2x1xf32, #tpu.memory_space<vmem>>, %arg1: memref<16x32xbf16, #tpu.memory_space<vmem>>, %arg2: memref<256x256xbf16, #tpu.memory_space<vmem>>, %arg3: memref<65x5xf32, #tpu.memory_space<vmem>>, %arg4: memref<2x5xf32, #tpu.memory_space<vmem>>, %arg5: memref<16x64xbf16, #tpu.memory_space<vmem>>) attributes {dimension_semantics = [], scalar_prefetch = 0 : i64, scratch_operands = 1 : i64, tpu.core_type = #tpu.core_type<tc>} {
    %c0 = arith.constant 0 : index
    %c0_0 = arith.constant 0 : index
    %0 = vector.load %arg0[%c0, %c0_0] : memref<2x1xf32, #tpu.memory_space<vmem>>, vector<2x1xf32>
    %cst = arith.constant 0.000000e+00 : f32
    %1 = vector.broadcast %cst : f32 to vector<2x1xf32>
    %2 = arith.cmpf ogt, %0, %1 : vector<2x1xf32>
    %3 = arith.extui %2 : vector<2x1xi1> to vector<2x1xi32>
    %4 = arith.sitofp %3 : vector<2x1xi32> to vector<2x1xf32>
    %cst_1 = arith.constant 1.000000e+00 : f32
    %5 = vector.broadcast %cst_1 : f32 to vector<2x1xf32>
    %6 = arith.cmpf ogt, %0, %5 : vector<2x1xf32>
    %7 = arith.extui %6 : vector<2x1xi1> to vector<2x1xi32>
    %8 = arith.sitofp %7 : vector<2x1xi32> to vector<2x1xf32>
    %cst_2 = arith.constant 2.000000e+00 : f32
    %9 = vector.broadcast %cst_2 : f32 to vector<2x1xf32>
    %10 = arith.cmpf ogt, %0, %9 : vector<2x1xf32>
    %11 = arith.extui %10 : vector<2x1xi1> to vector<2x1xi32>
    %12 = arith.sitofp %11 : vector<2x1xi32> to vector<2x1xf32>
    %cst_3 = arith.constant 3.000000e+00 : f32
    %13 = vector.broadcast %cst_3 : f32 to vector<2x1xf32>
    %14 = arith.cmpf ogt, %0, %13 : vector<2x1xf32>
    %15 = arith.extui %14 : vector<2x1xi1> to vector<2x1xi32>
    %16 = arith.sitofp %15 : vector<2x1xi32> to vector<2x1xf32>
    %cst_4 = arith.constant 4.000000e+00 : f32
    %17 = vector.broadcast %cst_4 : f32 to vector<2x1xf32>
    %18 = arith.cmpf ogt, %0, %17 : vector<2x1xf32>
    %19 = arith.extui %18 : vector<2x1xi1> to vector<2x1xi32>
    %20 = arith.sitofp %19 : vector<2x1xi32> to vector<2x1xf32>
    %cst_5 = arith.constant 5.000000e+00 : f32
    %21 = vector.broadcast %cst_5 : f32 to vector<2x1xf32>
    %22 = arith.cmpf ogt, %0, %21 : vector<2x1xf32>
    %23 = arith.extui %22 : vector<2x1xi1> to vector<2x1xi32>
    %24 = arith.sitofp %23 : vector<2x1xi32> to vector<2x1xf32>
    %cst_6 = arith.constant 6.000000e+00 : f32
    %25 = vector.broadcast %cst_6 : f32 to vector<2x1xf32>
    %26 = arith.cmpf ogt, %0, %25 : vector<2x1xf32>
    %27 = arith.extui %26 : vector<2x1xi1> to vector<2x1xi32>
    %28 = arith.sitofp %27 : vector<2x1xi32> to vector<2x1xf32>
    %cst_7 = arith.constant 7.000000e+00 : f32
    %29 = vector.broadcast %cst_7 : f32 to vector<2x1xf32>
    %30 = arith.cmpf ogt, %0, %29 : vector<2x1xf32>
    %31 = arith.extui %30 : vector<2x1xi1> to vector<2x1xi32>
    %32 = arith.sitofp %31 : vector<2x1xi32> to vector<2x1xf32>
    %33 = tpu.iota {dimensions = array<i32: 1>} : vector<2x256xi32>
    %c128_i32 = arith.constant 128 : i32
    %34 = vector.broadcast %c128_i32 : i32 to vector<2x256xi32>
    %35 = arith.cmpi sge, %33, %34 : vector<2x256xi32>
    %c192_i32 = arith.constant 192 : i32
    %36 = vector.broadcast %c192_i32 : i32 to vector<2x256xi32>
    %37 = arith.cmpi slt, %33, %36 : vector<2x256xi32>
    %38 = arith.andi %35, %37 : vector<2x256xi1>
    %c32_i32 = arith.constant 32 : i32
    %39 = vector.broadcast %c32_i32 : i32 to vector<2x256xi32>
    %40 = arith.andi %33, %39 : vector<2x256xi32>
    %c0_i32 = arith.constant 0 : i32
    %41 = vector.broadcast %c0_i32 : i32 to vector<2x256xi32>
    %42 = arith.cmpi eq, %40, %41 : vector<2x256xi32>
    %43 = tpu.iota {dimensions = array<i32: 1>} : vector<2x64xi32>
    %c32_i32_8 = arith.constant 32 : i32
    %44 = vector.broadcast %c32_i32_8 : i32 to vector<2x64xi32>
    %45 = arith.cmpi slt, %43, %44 : vector<2x64xi32>
    %c0_9 = arith.constant 0 : index
    %c0_10 = arith.constant 0 : index
    %46 = vector.load %arg1[%c0_9, %c0_10] : memref<16x32xbf16, #tpu.memory_space<vmem>>, vector<16x32xbf16>
    %c0_11 = arith.constant 0 : index
    %c0_12 = arith.constant 0 : index
    %47 = vector.load %arg2[%c0_11, %c0_12] : memref<256x256xbf16, #tpu.memory_space<vmem>>, vector<32x256xbf16>
    %c32 = arith.constant 32 : index
    %c0_13 = arith.constant 0 : index
    %48 = vector.load %arg2[%c32, %c0_13] : memref<256x256xbf16, #tpu.memory_space<vmem>>, vector<64x256xbf16>
    %c96 = arith.constant 96 : index
    %c0_14 = arith.constant 0 : index
    %49 = vector.load %arg2[%c96, %c0_14] : memref<256x256xbf16, #tpu.memory_space<vmem>>, vector<1x256xbf16>
    %50 = arith.extf %49 : vector<1x256xbf16> to vector<1x256xf32>
    %cst_15 = arith.constant dense<0.000000e+00> : vector<16x256xf32>
    %51 = tpu.matmul %46, %47, %cst_15 {dimension_numbers = #tpu.dot_dimension_numbers<[1], [0], [0], [1], [0, 0, 1, 1], [], []>} : vector<16x32xbf16>, vector<32x256xbf16>, vector<16x256xf32> -> vector<16x256xf32>
    %52 = vector.broadcast %50 : vector<1x256xf32> to vector<16x256xf32>
    %53 = arith.addf %51, %52 : vector<16x256xf32>
    %cst_16 = arith.constant 0.000000e+00 : f32
    %54 = vector.broadcast %cst_16 : f32 to vector<2x64xf32>
    %cst_17 = arith.constant 0.000000e+00 : f32
    %55 = vector.broadcast %cst_17 : f32 to vector<2x64xf32>
    %56 = vector.extract_strided_slice %53 {offsets = [0, 0], sizes = [2, 256], strides = [1, 1]} : vector<16x256xf32> to vector<2x256xf32>
    %57 = vector.extract_strided_slice %53 {offsets = [14, 0], sizes = [2, 256], strides = [1, 1]} : vector<16x256xf32> to vector<2x256xf32>
    %58 = arith.select %42, %56, %57 : vector<2x256xi1>, vector<2x256xf32>
    %59 = arith.truncf %54 : vector<2x64xf32> to vector<2x64xbf16>
    %cst_18 = arith.constant dense<0.000000e+00> : vector<2x256xf32>
    %60 = tpu.matmul %59, %48, %cst_18 {dimension_numbers = #tpu.dot_dimension_numbers<[1], [0], [0], [1], [0, 0, 1, 1], [], []>} : vector<2x64xbf16>, vector<64x256xbf16>, vector<2x256xf32> -> vector<2x256xf32>
    %61 = arith.addf %58, %60 : vector<2x256xf32>
    %cst_19 = arith.constant 5.000000e-01 : f32
    %62 = vector.broadcast %cst_19 : f32 to vector<2x256xf32>
    %63 = arith.mulf %62, %61 : vector<2x256xf32>
    %64 = arith.select %38, %61, %63 : vector<2x256xi1>, vector<2x256xf32>
    %65 = math.tanh %64 : vector<2x256xf32>
    %cst_20 = arith.constant 5.000000e-01 : f32
    %66 = vector.broadcast %cst_20 : f32 to vector<2x256xf32>
    %67 = arith.mulf %66, %65 : vector<2x256xf32>
    %cst_21 = arith.constant 5.000000e-01 : f32
    %68 = vector.broadcast %cst_21 : f32 to vector<2x256xf32>
    %69 = arith.addf %67, %68 : vector<2x256xf32>
    %70 = arith.select %38, %65, %69 : vector<2x256xi1>, vector<2x256xf32>
    %71 = vector.extract_strided_slice %70 {offsets = [0, 0], sizes = [2, 64], strides = [1, 1]} : vector<2x256xf32> to vector<2x64xf32>
    %72 = vector.extract_strided_slice %70 {offsets = [0, 64], sizes = [2, 64], strides = [1, 1]} : vector<2x256xf32> to vector<2x64xf32>
    %73 = vector.extract_strided_slice %70 {offsets = [0, 128], sizes = [2, 64], strides = [1, 1]} : vector<2x256xf32> to vector<2x64xf32>
    %74 = vector.extract_strided_slice %70 {offsets = [0, 192], sizes = [2, 64], strides = [1, 1]} : vector<2x256xf32> to vector<2x64xf32>
    %75 = arith.mulf %72, %55 : vector<2x64xf32>
    %76 = arith.mulf %71, %73 : vector<2x64xf32>
    %77 = arith.addf %75, %76 : vector<2x64xf32>
    %78 = math.tanh %77 : vector<2x64xf32>
    %79 = arith.mulf %74, %78 : vector<2x64xf32>
    %80 = vector.shape_cast %4 : vector<2x1xf32> to vector<2x1xf32>
    %81 = vector.broadcast %80 : vector<2x1xf32> to vector<2x64xf32>
    %82 = vector.shape_cast %32 : vector<2x1xf32> to vector<2x1xf32>
    %83 = vector.broadcast %82 : vector<2x1xf32> to vector<2x64xf32>
    %84 = arith.select %45, %81, %83 : vector<2x64xi1>, vector<2x64xf32>
    %85 = arith.mulf %84, %79 : vector<2x64xf32>
    %cst_22 = arith.constant 1.000000e+00 : f32
    %86 = vector.broadcast %cst_22 : f32 to vector<2x64xf32>
    %87 = arith.subf %86, %84 : vector<2x64xf32>
    %88 = arith.mulf %87, %54 : vector<2x64xf32>
    %89 = arith.addf %85, %88 : vector<2x64xf32>
    %90 = arith.mulf %84, %77 : vector<2x64xf32>
    %cst_23 = arith.constant 1.000000e+00 : f32
    %91 = vector.broadcast %cst_23 : f32 to vector<2x64xf32>
    %92 = arith.subf %91, %84 : vector<2x64xf32>
    %93 = arith.mulf %92, %55 : vector<2x64xf32>
    %94 = arith.addf %90, %93 : vector<2x64xf32>
    %95 = arith.mulf %84, %79 : vector<2x64xf32>
    %96 = vector.extract_strided_slice %95 {offsets = [0, 0], sizes = [2, 32], strides = [1, 1]} : vector<2x64xf32> to vector<2x32xf32>
    %97 = arith.truncf %96 : vector<2x32xf32> to vector<2x32xbf16>
    %c0_24 = arith.constant 0 : index
    %c0_25 = arith.constant 0 : index
    %98 = vector.load %arg5[%c0_24, %c0_25] : memref<16x64xbf16, #tpu.memory_space<vmem>>, vector<2x32xbf16>
    tpu.vector_store %arg5[%c0_24, %c0_25], %97 {strides = array<i32>} : memref<16x64xbf16, #tpu.memory_space<vmem>>, vector<2x32xbf16>,
    %99 = vector.extract_strided_slice %95 {offsets = [0, 32], sizes = [2, 32], strides = [1, 1]} : vector<2x64xf32> to vector<2x32xf32>
    %100 = arith.truncf %99 : vector<2x32xf32> to vector<2x32xbf16>
    %c14 = arith.constant 14 : index
    %c32_26 = arith.constant 32 : index
    %101 = vector.load %arg5[%c14, %c32_26] : memref<16x64xbf16, #tpu.memory_space<vmem>>, vector<2x32xbf16>
    tpu.vector_store %arg5[%c14, %c32_26], %100 {strides = array<i32>} : memref<16x64xbf16, #tpu.memory_space<vmem>>, vector<2x32xbf16>,
    %102 = vector.extract_strided_slice %53 {offsets = [2, 0], sizes = [2, 256], strides = [1, 1]} : vector<16x256xf32> to vector<2x256xf32>
    %103 = vector.extract_strided_slice %53 {offsets = [12, 0], sizes = [2, 256], strides = [1, 1]} : vector<16x256xf32> to vector<2x256xf32>
    %104 = arith.select %42, %102, %103 : vector<2x256xi1>, vector<2x256xf32>
    %105 = arith.truncf %89 : vector<2x64xf32> to vector<2x64xbf16>
    %cst_27 = arith.constant dense<0.000000e+00> : vector<2x256xf32>
    %106 = tpu.matmul %105, %48, %cst_27 {dimension_numbers = #tpu.dot_dimension_numbers<[1], [0], [0], [1], [0, 0, 1, 1], [], []>} : vector<2x64xbf16>, vector<64x256xbf16>, vector<2x256xf32> -> vector<2x256xf32>
    %107 = arith.addf %104, %106 : vector<2x256xf32>
    %cst_28 = arith.constant 5.000000e-01 : f32
    %108 = vector.broadcast %cst_28 : f32 to vector<2x256xf32>
    %109 = arith.mulf %108, %107 : vector<2x256xf32>
    %110 = arith.select %38, %107, %109 : vector<2x256xi1>, vector<2x256xf32>
    %111 = math.tanh %110 : vector<2x256xf32>
    %cst_29 = arith.constant 5.000000e-01 : f32
    %112 = vector.broadcast %cst_29 : f32 to vector<2x256xf32>
    %113 = arith.mulf %112, %111 : vector<2x256xf32>
    %cst_30 = arith.constant 5.000000e-01 : f32
    %114 = vector.broadcast %cst_30 : f32 to vector<2x256xf32>
    %115 = arith.addf %113, %114 : vector<2x256xf32>
    %116 = arith.select %38, %111, %115 : vector<2x256xi1>, vector<2x256xf32>
    %117 = vector.extract_strided_slice %116 {offsets = [0, 0], sizes = [2, 64], strides = [1, 1]} : vector<2x256xf32> to vector<2x64xf32>
    %118 = vector.extract_strided_slice %116 {offsets = [0, 64], sizes = [2, 64], strides = [1, 1]} : vector<2x256xf32> to vector<2x64xf32>
    %119 = vector.extract_strided_slice %116 {offsets = [0, 128], sizes = [2, 64], strides = [1, 1]} : vector<2x256xf32> to vector<2x64xf32>
    %120 = vector.extract_strided_slice %116 {offsets = [0, 192], sizes = [2, 64], strides = [1, 1]} : vector<2x256xf32> to vector<2x64xf32>
    %121 = arith.mulf %118, %94 : vector<2x64xf32>
    %122 = arith.mulf %117, %119 : vector<2x64xf32>
    %123 = arith.addf %121, %122 : vector<2x64xf32>
    %124 = math.tanh %123 : vector<2x64xf32>
    %125 = arith.mulf %120, %124 : vector<2x64xf32>
    %126 = vector.shape_cast %8 : vector<2x1xf32> to vector<2x1xf32>
    %127 = vector.broadcast %126 : vector<2x1xf32> to vector<2x64xf32>
    %128 = vector.shape_cast %28 : vector<2x1xf32> to vector<2x1xf32>
    %129 = vector.broadcast %128 : vector<2x1xf32> to vector<2x64xf32>
    %130 = arith.select %45, %127, %129 : vector<2x64xi1>, vector<2x64xf32>
    %131 = arith.mulf %130, %125 : vector<2x64xf32>
    %cst_31 = arith.constant 1.000000e+00 : f32
    %132 = vector.broadcast %cst_31 : f32 to vector<2x64xf32>
    %133 = arith.subf %132, %130 : vector<2x64xf32>
    %134 = arith.mulf %133, %89 : vector<2x64xf32>
    %135 = arith.addf %131, %134 : vector<2x64xf32>
    %136 = arith.mulf %130, %123 : vector<2x64xf32>
    %cst_32 = arith.constant 1.000000e+00 : f32
    %137 = vector.broadcast %cst_32 : f32 to vector<2x64xf32>
    %138 = arith.subf %137, %130 : vector<2x64xf32>
    %139 = arith.mulf %138, %94 : vector<2x64xf32>
    %140 = arith.addf %136, %139 : vector<2x64xf32>
    %141 = arith.mulf %130, %125 : vector<2x64xf32>
    %142 = vector.extract_strided_slice %141 {offsets = [0, 0], sizes = [2, 32], strides = [1, 1]} : vector<2x64xf32> to vector<2x32xf32>
    %143 = arith.truncf %142 : vector<2x32xf32> to vector<2x32xbf16>
    %c2 = arith.constant 2 : index
    %c0_33 = arith.constant 0 : index
    %144 = vector.load %arg5[%c2, %c0_33] : memref<16x64xbf16, #tpu.memory_space<vmem>>, vector<2x32xbf16>
    tpu.vector_store %arg5[%c2, %c0_33], %143 {strides = array<i32>} : memref<16x64xbf16, #tpu.memory_space<vmem>>, vector<2x32xbf16>,
    %145 = vector.extract_strided_slice %141 {offsets = [0, 32], sizes = [2, 32], strides = [1, 1]} : vector<2x64xf32> to vector<2x32xf32>
    %146 = arith.truncf %145 : vector<2x32xf32> to vector<2x32xbf16>
    %c12 = arith.constant 12 : index
    %c32_34 = arith.constant 32 : index
    %147 = vector.load %arg5[%c12, %c32_34] : memref<16x64xbf16, #tpu.memory_space<vmem>>, vector<2x32xbf16>
    tpu.vector_store %arg5[%c12, %c32_34], %146 {strides = array<i32>} : memref<16x64xbf16, #tpu.memory_space<vmem>>, vector<2x32xbf16>,
    %148 = vector.extract_strided_slice %53 {offsets = [4, 0], sizes = [2, 256], strides = [1, 1]} : vector<16x256xf32> to vector<2x256xf32>
    %149 = vector.extract_strided_slice %53 {offsets = [10, 0], sizes = [2, 256], strides = [1, 1]} : vector<16x256xf32> to vector<2x256xf32>
    %150 = arith.select %42, %148, %149 : vector<2x256xi1>, vector<2x256xf32>
    %151 = arith.truncf %135 : vector<2x64xf32> to vector<2x64xbf16>
    %cst_35 = arith.constant dense<0.000000e+00> : vector<2x256xf32>
    %152 = tpu.matmul %151, %48, %cst_35 {dimension_numbers = #tpu.dot_dimension_numbers<[1], [0], [0], [1], [0, 0, 1, 1], [], []>} : vector<2x64xbf16>, vector<64x256xbf16>, vector<2x256xf32> -> vector<2x256xf32>
    %153 = arith.addf %150, %152 : vector<2x256xf32>
    %cst_36 = arith.constant 5.000000e-01 : f32
    %154 = vector.broadcast %cst_36 : f32 to vector<2x256xf32>
    %155 = arith.mulf %154, %153 : vector<2x256xf32>
    %156 = arith.select %38, %153, %155 : vector<2x256xi1>, vector<2x256xf32>
    %157 = math.tanh %156 : vector<2x256xf32>
    %cst_37 = arith.constant 5.000000e-01 : f32
    %158 = vector.broadcast %cst_37 : f32 to vector<2x256xf32>
    %159 = arith.mulf %158, %157 : vector<2x256xf32>
    %cst_38 = arith.constant 5.000000e-01 : f32
    %160 = vector.broadcast %cst_38 : f32 to vector<2x256xf32>
    %161 = arith.addf %159, %160 : vector<2x256xf32>
    %162 = arith.select %38, %157, %161 : vector<2x256xi1>, vector<2x256xf32>
    %163 = vector.extract_strided_slice %162 {offsets = [0, 0], sizes = [2, 64], strides = [1, 1]} : vector<2x256xf32> to vector<2x64xf32>
    %164 = vector.extract_strided_slice %162 {offsets = [0, 64], sizes = [2, 64], strides = [1, 1]} : vector<2x256xf32> to vector<2x64xf32>
    %165 = vector.extract_strided_slice %162 {offsets = [0, 128], sizes = [2, 64], strides = [1, 1]} : vector<2x256xf32> to vector<2x64xf32>
    %166 = vector.extract_strided_slice %162 {offsets = [0, 192], sizes = [2, 64], strides = [1, 1]} : vector<2x256xf32> to vector<2x64xf32>
    %167 = arith.mulf %164, %140 : vector<2x64xf32>
    %168 = arith.mulf %163, %165 : vector<2x64xf32>
    %169 = arith.addf %167, %168 : vector<2x64xf32>
    %170 = math.tanh %169 : vector<2x64xf32>
    %171 = arith.mulf %166, %170 : vector<2x64xf32>
    %172 = vector.shape_cast %12 : vector<2x1xf32> to vector<2x1xf32>
    %173 = vector.broadcast %172 : vector<2x1xf32> to vector<2x64xf32>
    %174 = vector.shape_cast %24 : vector<2x1xf32> to vector<2x1xf32>
    %175 = vector.broadcast %174 : vector<2x1xf32> to vector<2x64xf32>
    %176 = arith.select %45, %173, %175 : vector<2x64xi1>, vector<2x64xf32>
    %177 = arith.mulf %176, %171 : vector<2x64xf32>
    %cst_39 = arith.constant 1.000000e+00 : f32
    %178 = vector.broadcast %cst_39 : f32 to vector<2x64xf32>
    %179 = arith.subf %178, %176 : vector<2x64xf32>
    %180 = arith.mulf %179, %135 : vector<2x64xf32>
    %181 = arith.addf %177, %180 : vector<2x64xf32>
    %182 = arith.mulf %176, %169 : vector<2x64xf32>
    %cst_40 = arith.constant 1.000000e+00 : f32
    %183 = vector.broadcast %cst_40 : f32 to vector<2x64xf32>
    %184 = arith.subf %183, %176 : vector<2x64xf32>
    %185 = arith.mulf %184, %140 : vector<2x64xf32>
    %186 = arith.addf %182, %185 : vector<2x64xf32>
    %187 = arith.mulf %176, %171 : vector<2x64xf32>
    %188 = vector.extract_strided_slice %187 {offsets = [0, 0], sizes = [2, 32], strides = [1, 1]} : vector<2x64xf32> to vector<2x32xf32>
    %189 = arith.truncf %188 : vector<2x32xf32> to vector<2x32xbf16>
    %c4 = arith.constant 4 : index
    %c0_41 = arith.constant 0 : index
    %190 = vector.load %arg5[%c4, %c0_41] : memref<16x64xbf16, #tpu.memory_space<vmem>>, vector<2x32xbf16>
    tpu.vector_store %arg5[%c4, %c0_41], %189 {strides = array<i32>} : memref<16x64xbf16, #tpu.memory_space<vmem>>, vector<2x32xbf16>,
    %191 = vector.extract_strided_slice %187 {offsets = [0, 32], sizes = [2, 32], strides = [1, 1]} : vector<2x64xf32> to vector<2x32xf32>
    %192 = arith.truncf %191 : vector<2x32xf32> to vector<2x32xbf16>
    %c10 = arith.constant 10 : index
    %c32_42 = arith.constant 32 : index
    %193 = vector.load %arg5[%c10, %c32_42] : memref<16x64xbf16, #tpu.memory_space<vmem>>, vector<2x32xbf16>
    tpu.vector_store %arg5[%c10, %c32_42], %192 {strides = array<i32>} : memref<16x64xbf16, #tpu.memory_space<vmem>>, vector<2x32xbf16>,
    %194 = vector.extract_strided_slice %53 {offsets = [6, 0], sizes = [2, 256], strides = [1, 1]} : vector<16x256xf32> to vector<2x256xf32>
    %195 = vector.extract_strided_slice %53 {offsets = [8, 0], sizes = [2, 256], strides = [1, 1]} : vector<16x256xf32> to vector<2x256xf32>
    %196 = arith.select %42, %194, %195 : vector<2x256xi1>, vector<2x256xf32>
    %197 = arith.truncf %181 : vector<2x64xf32> to vector<2x64xbf16>
    %cst_43 = arith.constant dense<0.000000e+00> : vector<2x256xf32>
    %198 = tpu.matmul %197, %48, %cst_43 {dimension_numbers = #tpu.dot_dimension_numbers<[1], [0], [0], [1], [0, 0, 1, 1], [], []>} : vector<2x64xbf16>, vector<64x256xbf16>, vector<2x256xf32> -> vector<2x256xf32>
    %199 = arith.addf %196, %198 : vector<2x256xf32>
    %cst_44 = arith.constant 5.000000e-01 : f32
    %200 = vector.broadcast %cst_44 : f32 to vector<2x256xf32>
    %201 = arith.mulf %200, %199 : vector<2x256xf32>
    %202 = arith.select %38, %199, %201 : vector<2x256xi1>, vector<2x256xf32>
    %203 = math.tanh %202 : vector<2x256xf32>
    %cst_45 = arith.constant 5.000000e-01 : f32
    %204 = vector.broadcast %cst_45 : f32 to vector<2x256xf32>
    %205 = arith.mulf %204, %203 : vector<2x256xf32>
    %cst_46 = arith.constant 5.000000e-01 : f32
    %206 = vector.broadcast %cst_46 : f32 to vector<2x256xf32>
    %207 = arith.addf %205, %206 : vector<2x256xf32>
    %208 = arith.select %38, %203, %207 : vector<2x256xi1>, vector<2x256xf32>
    %209 = vector.extract_strided_slice %208 {offsets = [0, 0], sizes = [2, 64], strides = [1, 1]} : vector<2x256xf32> to vector<2x64xf32>
    %210 = vector.extract_strided_slice %208 {offsets = [0, 64], sizes = [2, 64], strides = [1, 1]} : vector<2x256xf32> to vector<2x64xf32>
    %211 = vector.extract_strided_slice %208 {offsets = [0, 128], sizes = [2, 64], strides = [1, 1]} : vector<2x256xf32> to vector<2x64xf32>
    %212 = vector.extract_strided_slice %208 {offsets = [0, 192], sizes = [2, 64], strides = [1, 1]} : vector<2x256xf32> to vector<2x64xf32>
    %213 = arith.mulf %210, %186 : vector<2x64xf32>
    %214 = arith.mulf %209, %211 : vector<2x64xf32>
    %215 = arith.addf %213, %214 : vector<2x64xf32>
    %216 = math.tanh %215 : vector<2x64xf32>
    %217 = arith.mulf %212, %216 : vector<2x64xf32>
    %218 = vector.shape_cast %16 : vector<2x1xf32> to vector<2x1xf32>
    %219 = vector.broadcast %218 : vector<2x1xf32> to vector<2x64xf32>
    %220 = vector.shape_cast %20 : vector<2x1xf32> to vector<2x1xf32>
    %221 = vector.broadcast %220 : vector<2x1xf32> to vector<2x64xf32>
    %222 = arith.select %45, %219, %221 : vector<2x64xi1>, vector<2x64xf32>
    %223 = arith.mulf %222, %217 : vector<2x64xf32>
    %cst_47 = arith.constant 1.000000e+00 : f32
    %224 = vector.broadcast %cst_47 : f32 to vector<2x64xf32>
    %225 = arith.subf %224, %222 : vector<2x64xf32>
    %226 = arith.mulf %225, %181 : vector<2x64xf32>
    %227 = arith.addf %223, %226 : vector<2x64xf32>
    %228 = arith.mulf %222, %215 : vector<2x64xf32>
    %cst_48 = arith.constant 1.000000e+00 : f32
    %229 = vector.broadcast %cst_48 : f32 to vector<2x64xf32>
    %230 = arith.subf %229, %222 : vector<2x64xf32>
    %231 = arith.mulf %230, %186 : vector<2x64xf32>
    %232 = arith.addf %228, %231 : vector<2x64xf32>
    %233 = arith.mulf %222, %217 : vector<2x64xf32>
    %234 = vector.extract_strided_slice %233 {offsets = [0, 0], sizes = [2, 32], strides = [1, 1]} : vector<2x64xf32> to vector<2x32xf32>
    %235 = arith.truncf %234 : vector<2x32xf32> to vector<2x32xbf16>
    %c6 = arith.constant 6 : index
    %c0_49 = arith.constant 0 : index
    %236 = vector.load %arg5[%c6, %c0_49] : memref<16x64xbf16, #tpu.memory_space<vmem>>, vector<2x32xbf16>
    tpu.vector_store %arg5[%c6, %c0_49], %235 {strides = array<i32>} : memref<16x64xbf16, #tpu.memory_space<vmem>>, vector<2x32xbf16>,
    %237 = vector.extract_strided_slice %233 {offsets = [0, 32], sizes = [2, 32], strides = [1, 1]} : vector<2x64xf32> to vector<2x32xf32>
    %238 = arith.truncf %237 : vector<2x32xf32> to vector<2x32xbf16>
    %c8 = arith.constant 8 : index
    %c32_50 = arith.constant 32 : index
    %239 = vector.load %arg5[%c8, %c32_50] : memref<16x64xbf16, #tpu.memory_space<vmem>>, vector<2x32xbf16>
    tpu.vector_store %arg5[%c8, %c32_50], %238 {strides = array<i32>} : memref<16x64xbf16, #tpu.memory_space<vmem>>, vector<2x32xbf16>,
    %240 = vector.extract_strided_slice %53 {offsets = [8, 0], sizes = [2, 256], strides = [1, 1]} : vector<16x256xf32> to vector<2x256xf32>
    %241 = vector.extract_strided_slice %53 {offsets = [6, 0], sizes = [2, 256], strides = [1, 1]} : vector<16x256xf32> to vector<2x256xf32>
    %242 = arith.select %42, %240, %241 : vector<2x256xi1>, vector<2x256xf32>
    %243 = arith.truncf %227 : vector<2x64xf32> to vector<2x64xbf16>
    %cst_51 = arith.constant dense<0.000000e+00> : vector<2x256xf32>
    %244 = tpu.matmul %243, %48, %cst_51 {dimension_numbers = #tpu.dot_dimension_numbers<[1], [0], [0], [1], [0, 0, 1, 1], [], []>} : vector<2x64xbf16>, vector<64x256xbf16>, vector<2x256xf32> -> vector<2x256xf32>
    %245 = arith.addf %242, %244 : vector<2x256xf32>
    %cst_52 = arith.constant 5.000000e-01 : f32
    %246 = vector.broadcast %cst_52 : f32 to vector<2x256xf32>
    %247 = arith.mulf %246, %245 : vector<2x256xf32>
    %248 = arith.select %38, %245, %247 : vector<2x256xi1>, vector<2x256xf32>
    %249 = math.tanh %248 : vector<2x256xf32>
    %cst_53 = arith.constant 5.000000e-01 : f32
    %250 = vector.broadcast %cst_53 : f32 to vector<2x256xf32>
    %251 = arith.mulf %250, %249 : vector<2x256xf32>
    %cst_54 = arith.constant 5.000000e-01 : f32
    %252 = vector.broadcast %cst_54 : f32 to vector<2x256xf32>
    %253 = arith.addf %251, %252 : vector<2x256xf32>
    %254 = arith.select %38, %249, %253 : vector<2x256xi1>, vector<2x256xf32>
    %255 = vector.extract_strided_slice %254 {offsets = [0, 0], sizes = [2, 64], strides = [1, 1]} : vector<2x256xf32> to vector<2x64xf32>
    %256 = vector.extract_strided_slice %254 {offsets = [0, 64], sizes = [2, 64], strides = [1, 1]} : vector<2x256xf32> to vector<2x64xf32>
    %257 = vector.extract_strided_slice %254 {offsets = [0, 128], sizes = [2, 64], strides = [1, 1]} : vector<2x256xf32> to vector<2x64xf32>
    %258 = vector.extract_strided_slice %254 {offsets = [0, 192], sizes = [2, 64], strides = [1, 1]} : vector<2x256xf32> to vector<2x64xf32>
    %259 = arith.mulf %256, %232 : vector<2x64xf32>
    %260 = arith.mulf %255, %257 : vector<2x64xf32>
    %261 = arith.addf %259, %260 : vector<2x64xf32>
    %262 = math.tanh %261 : vector<2x64xf32>
    %263 = arith.mulf %258, %262 : vector<2x64xf32>
    %264 = vector.shape_cast %20 : vector<2x1xf32> to vector<2x1xf32>
    %265 = vector.broadcast %264 : vector<2x1xf32> to vector<2x64xf32>
    %266 = vector.shape_cast %16 : vector<2x1xf32> to vector<2x1xf32>
    %267 = vector.broadcast %266 : vector<2x1xf32> to vector<2x64xf32>
    %268 = arith.select %45, %265, %267 : vector<2x64xi1>, vector<2x64xf32>
    %269 = arith.mulf %268, %263 : vector<2x64xf32>
    %cst_55 = arith.constant 1.000000e+00 : f32
    %270 = vector.broadcast %cst_55 : f32 to vector<2x64xf32>
    %271 = arith.subf %270, %268 : vector<2x64xf32>
    %272 = arith.mulf %271, %227 : vector<2x64xf32>
    %273 = arith.addf %269, %272 : vector<2x64xf32>
    %274 = arith.mulf %268, %261 : vector<2x64xf32>
    %cst_56 = arith.constant 1.000000e+00 : f32
    %275 = vector.broadcast %cst_56 : f32 to vector<2x64xf32>
    %276 = arith.subf %275, %268 : vector<2x64xf32>
    %277 = arith.mulf %276, %232 : vector<2x64xf32>
    %278 = arith.addf %274, %277 : vector<2x64xf32>
    %279 = arith.mulf %268, %263 : vector<2x64xf32>
    %280 = vector.extract_strided_slice %279 {offsets = [0, 0], sizes = [2, 32], strides = [1, 1]} : vector<2x64xf32> to vector<2x32xf32>
    %281 = arith.truncf %280 : vector<2x32xf32> to vector<2x32xbf16>
    %c8_57 = arith.constant 8 : index
    %c0_58 = arith.constant 0 : index
    %282 = vector.load %arg5[%c8_57, %c0_58] : memref<16x64xbf16, #tpu.memory_space<vmem>>, vector<2x32xbf16>
    tpu.vector_store %arg5[%c8_57, %c0_58], %281 {strides = array<i32>} : memref<16x64xbf16, #tpu.memory_space<vmem>>, vector<2x32xbf16>,
    %283 = vector.extract_strided_slice %279 {offsets = [0, 32], sizes = [2, 32], strides = [1, 1]} : vector<2x64xf32> to vector<2x32xf32>
    %284 = arith.truncf %283 : vector<2x32xf32> to vector<2x32xbf16>
    %c6_59 = arith.constant 6 : index
    %c32_60 = arith.constant 32 : index
    %285 = vector.load %arg5[%c6_59, %c32_60] : memref<16x64xbf16, #tpu.memory_space<vmem>>, vector<2x32xbf16>
    tpu.vector_store %arg5[%c6_59, %c32_60], %284 {strides = array<i32>} : memref<16x64xbf16, #tpu.memory_space<vmem>>, vector<2x32xbf16>,
    %286 = vector.extract_strided_slice %53 {offsets = [10, 0], sizes = [2, 256], strides = [1, 1]} : vector<16x256xf32> to vector<2x256xf32>
    %287 = vector.extract_strided_slice %53 {offsets = [4, 0], sizes = [2, 256], strides = [1, 1]} : vector<16x256xf32> to vector<2x256xf32>
    %288 = arith.select %42, %286, %287 : vector<2x256xi1>, vector<2x256xf32>
    %289 = arith.truncf %273 : vector<2x64xf32> to vector<2x64xbf16>
    %cst_61 = arith.constant dense<0.000000e+00> : vector<2x256xf32>
    %290 = tpu.matmul %289, %48, %cst_61 {dimension_numbers = #tpu.dot_dimension_numbers<[1], [0], [0], [1], [0, 0, 1, 1], [], []>} : vector<2x64xbf16>, vector<64x256xbf16>, vector<2x256xf32> -> vector<2x256xf32>
    %291 = arith.addf %288, %290 : vector<2x256xf32>
    %cst_62 = arith.constant 5.000000e-01 : f32
    %292 = vector.broadcast %cst_62 : f32 to vector<2x256xf32>
    %293 = arith.mulf %292, %291 : vector<2x256xf32>
    %294 = arith.select %38, %291, %293 : vector<2x256xi1>, vector<2x256xf32>
    %295 = math.tanh %294 : vector<2x256xf32>
    %cst_63 = arith.constant 5.000000e-01 : f32
    %296 = vector.broadcast %cst_63 : f32 to vector<2x256xf32>
    %297 = arith.mulf %296, %295 : vector<2x256xf32>
    %cst_64 = arith.constant 5.000000e-01 : f32
    %298 = vector.broadcast %cst_64 : f32 to vector<2x256xf32>
    %299 = arith.addf %297, %298 : vector<2x256xf32>
    %300 = arith.select %38, %295, %299 : vector<2x256xi1>, vector<2x256xf32>
    %301 = vector.extract_strided_slice %300 {offsets = [0, 0], sizes = [2, 64], strides = [1, 1]} : vector<2x256xf32> to vector<2x64xf32>
    %302 = vector.extract_strided_slice %300 {offsets = [0, 64], sizes = [2, 64], strides = [1, 1]} : vector<2x256xf32> to vector<2x64xf32>
    %303 = vector.extract_strided_slice %300 {offsets = [0, 128], sizes = [2, 64], strides = [1, 1]} : vector<2x256xf32> to vector<2x64xf32>
    %304 = vector.extract_strided_slice %300 {offsets = [0, 192], sizes = [2, 64], strides = [1, 1]} : vector<2x256xf32> to vector<2x64xf32>
    %305 = arith.mulf %302, %278 : vector<2x64xf32>
    %306 = arith.mulf %301, %303 : vector<2x64xf32>
    %307 = arith.addf %305, %306 : vector<2x64xf32>
    %308 = math.tanh %307 : vector<2x64xf32>
    %309 = arith.mulf %304, %308 : vector<2x64xf32>
    %310 = vector.shape_cast %24 : vector<2x1xf32> to vector<2x1xf32>
    %311 = vector.broadcast %310 : vector<2x1xf32> to vector<2x64xf32>
    %312 = vector.shape_cast %12 : vector<2x1xf32> to vector<2x1xf32>
    %313 = vector.broadcast %312 : vector<2x1xf32> to vector<2x64xf32>
    %314 = arith.select %45, %311, %313 : vector<2x64xi1>, vector<2x64xf32>
    %315 = arith.mulf %314, %309 : vector<2x64xf32>
    %cst_65 = arith.constant 1.000000e+00 : f32
    %316 = vector.broadcast %cst_65 : f32 to vector<2x64xf32>
    %317 = arith.subf %316, %314 : vector<2x64xf32>
    %318 = arith.mulf %317, %273 : vector<2x64xf32>
    %319 = arith.addf %315, %318 : vector<2x64xf32>
    %320 = arith.mulf %314, %307 : vector<2x64xf32>
    %cst_66 = arith.constant 1.000000e+00 : f32
    %321 = vector.broadcast %cst_66 : f32 to vector<2x64xf32>
    %322 = arith.subf %321, %314 : vector<2x64xf32>
    %323 = arith.mulf %322, %278 : vector<2x64xf32>
    %324 = arith.addf %320, %323 : vector<2x64xf32>
    %325 = arith.mulf %314, %309 : vector<2x64xf32>
    %326 = vector.extract_strided_slice %325 {offsets = [0, 0], sizes = [2, 32], strides = [1, 1]} : vector<2x64xf32> to vector<2x32xf32>
    %327 = arith.truncf %326 : vector<2x32xf32> to vector<2x32xbf16>
    %c10_67 = arith.constant 10 : index
    %c0_68 = arith.constant 0 : index
    %328 = vector.load %arg5[%c10_67, %c0_68] : memref<16x64xbf16, #tpu.memory_space<vmem>>, vector<2x32xbf16>
    tpu.vector_store %arg5[%c10_67, %c0_68], %327 {strides = array<i32>} : memref<16x64xbf16, #tpu.memory_space<vmem>>, vector<2x32xbf16>,
    %329 = vector.extract_strided_slice %325 {offsets = [0, 32], sizes = [2, 32], strides = [1, 1]} : vector<2x64xf32> to vector<2x32xf32>
    %330 = arith.truncf %329 : vector<2x32xf32> to vector<2x32xbf16>
    %c4_69 = arith.constant 4 : index
    %c32_70 = arith.constant 32 : index
    %331 = vector.load %arg5[%c4_69, %c32_70] : memref<16x64xbf16, #tpu.memory_space<vmem>>, vector<2x32xbf16>
    tpu.vector_store %arg5[%c4_69, %c32_70], %330 {strides = array<i32>} : memref<16x64xbf16, #tpu.memory_space<vmem>>, vector<2x32xbf16>,
    %332 = vector.extract_strided_slice %53 {offsets = [12, 0], sizes = [2, 256], strides = [1, 1]} : vector<16x256xf32> to vector<2x256xf32>
    %333 = vector.extract_strided_slice %53 {offsets = [2, 0], sizes = [2, 256], strides = [1, 1]} : vector<16x256xf32> to vector<2x256xf32>
    %334 = arith.select %42, %332, %333 : vector<2x256xi1>, vector<2x256xf32>
    %335 = arith.truncf %319 : vector<2x64xf32> to vector<2x64xbf16>
    %cst_71 = arith.constant dense<0.000000e+00> : vector<2x256xf32>
    %336 = tpu.matmul %335, %48, %cst_71 {dimension_numbers = #tpu.dot_dimension_numbers<[1], [0], [0], [1], [0, 0, 1, 1], [], []>} : vector<2x64xbf16>, vector<64x256xbf16>, vector<2x256xf32> -> vector<2x256xf32>
    %337 = arith.addf %334, %336 : vector<2x256xf32>
    %cst_72 = arith.constant 5.000000e-01 : f32
    %338 = vector.broadcast %cst_72 : f32 to vector<2x256xf32>
    %339 = arith.mulf %338, %337 : vector<2x256xf32>
    %340 = arith.select %38, %337, %339 : vector<2x256xi1>, vector<2x256xf32>
    %341 = math.tanh %340 : vector<2x256xf32>
    %cst_73 = arith.constant 5.000000e-01 : f32
    %342 = vector.broadcast %cst_73 : f32 to vector<2x256xf32>
    %343 = arith.mulf %342, %341 : vector<2x256xf32>
    %cst_74 = arith.constant 5.000000e-01 : f32
    %344 = vector.broadcast %cst_74 : f32 to vector<2x256xf32>
    %345 = arith.addf %343, %344 : vector<2x256xf32>
    %346 = arith.select %38, %341, %345 : vector<2x256xi1>, vector<2x256xf32>
    %347 = vector.extract_strided_slice %346 {offsets = [0, 0], sizes = [2, 64], strides = [1, 1]} : vector<2x256xf32> to vector<2x64xf32>
    %348 = vector.extract_strided_slice %346 {offsets = [0, 64], sizes = [2, 64], strides = [1, 1]} : vector<2x256xf32> to vector<2x64xf32>
    %349 = vector.extract_strided_slice %346 {offsets = [0, 128], sizes = [2, 64], strides = [1, 1]} : vector<2x256xf32> to vector<2x64xf32>
    %350 = vector.extract_strided_slice %346 {offsets = [0, 192], sizes = [2, 64], strides = [1, 1]} : vector<2x256xf32> to vector<2x64xf32>
    %351 = arith.mulf %348, %324 : vector<2x64xf32>
    %352 = arith.mulf %347, %349 : vector<2x64xf32>
    %353 = arith.addf %351, %352 : vector<2x64xf32>
    %354 = math.tanh %353 : vector<2x64xf32>
    %355 = arith.mulf %350, %354 : vector<2x64xf32>
    %356 = vector.shape_cast %28 : vector<2x1xf32> to vector<2x1xf32>
    %357 = vector.broadcast %356 : vector<2x1xf32> to vector<2x64xf32>
    %358 = vector.shape_cast %8 : vector<2x1xf32> to vector<2x1xf32>
    %359 = vector.broadcast %358 : vector<2x1xf32> to vector<2x64xf32>
    %360 = arith.select %45, %357, %359 : vector<2x64xi1>, vector<2x64xf32>
    %361 = arith.mulf %360, %355 : vector<2x64xf32>
    %cst_75 = arith.constant 1.000000e+00 : f32
    %362 = vector.broadcast %cst_75 : f32 to vector<2x64xf32>
    %363 = arith.subf %362, %360 : vector<2x64xf32>
    %364 = arith.mulf %363, %319 : vector<2x64xf32>
    %365 = arith.addf %361, %364 : vector<2x64xf32>
    %366 = arith.mulf %360, %353 : vector<2x64xf32>
    %cst_76 = arith.constant 1.000000e+00 : f32
    %367 = vector.broadcast %cst_76 : f32 to vector<2x64xf32>
    %368 = arith.subf %367, %360 : vector<2x64xf32>
    %369 = arith.mulf %368, %324 : vector<2x64xf32>
    %370 = arith.addf %366, %369 : vector<2x64xf32>
    %371 = arith.mulf %360, %355 : vector<2x64xf32>
    %372 = vector.extract_strided_slice %371 {offsets = [0, 0], sizes = [2, 32], strides = [1, 1]} : vector<2x64xf32> to vector<2x32xf32>
    %373 = arith.truncf %372 : vector<2x32xf32> to vector<2x32xbf16>
    %c12_77 = arith.constant 12 : index
    %c0_78 = arith.constant 0 : index
    %374 = vector.load %arg5[%c12_77, %c0_78] : memref<16x64xbf16, #tpu.memory_space<vmem>>, vector<2x32xbf16>
    tpu.vector_store %arg5[%c12_77, %c0_78], %373 {strides = array<i32>} : memref<16x64xbf16, #tpu.memory_space<vmem>>, vector<2x32xbf16>,
    %375 = vector.extract_strided_slice %371 {offsets = [0, 32], sizes = [2, 32], strides = [1, 1]} : vector<2x64xf32> to vector<2x32xf32>
    %376 = arith.truncf %375 : vector<2x32xf32> to vector<2x32xbf16>
    %c2_79 = arith.constant 2 : index
    %c32_80 = arith.constant 32 : index
    %377 = vector.load %arg5[%c2_79, %c32_80] : memref<16x64xbf16, #tpu.memory_space<vmem>>, vector<2x32xbf16>
    tpu.vector_store %arg5[%c2_79, %c32_80], %376 {strides = array<i32>} : memref<16x64xbf16, #tpu.memory_space<vmem>>, vector<2x32xbf16>,
    %378 = vector.extract_strided_slice %53 {offsets = [14, 0], sizes = [2, 256], strides = [1, 1]} : vector<16x256xf32> to vector<2x256xf32>
    %379 = vector.extract_strided_slice %53 {offsets = [0, 0], sizes = [2, 256], strides = [1, 1]} : vector<16x256xf32> to vector<2x256xf32>
    %380 = arith.select %42, %378, %379 : vector<2x256xi1>, vector<2x256xf32>
    %381 = arith.truncf %365 : vector<2x64xf32> to vector<2x64xbf16>
    %cst_81 = arith.constant dense<0.000000e+00> : vector<2x256xf32>
    %382 = tpu.matmul %381, %48, %cst_81 {dimension_numbers = #tpu.dot_dimension_numbers<[1], [0], [0], [1], [0, 0, 1, 1], [], []>} : vector<2x64xbf16>, vector<64x256xbf16>, vector<2x256xf32> -> vector<2x256xf32>
    %383 = arith.addf %380, %382 : vector<2x256xf32>
    %cst_82 = arith.constant 5.000000e-01 : f32
    %384 = vector.broadcast %cst_82 : f32 to vector<2x256xf32>
    %385 = arith.mulf %384, %383 : vector<2x256xf32>
    %386 = arith.select %38, %383, %385 : vector<2x256xi1>, vector<2x256xf32>
    %387 = math.tanh %386 : vector<2x256xf32>
    %cst_83 = arith.constant 5.000000e-01 : f32
    %388 = vector.broadcast %cst_83 : f32 to vector<2x256xf32>
    %389 = arith.mulf %388, %387 : vector<2x256xf32>
    %cst_84 = arith.constant 5.000000e-01 : f32
    %390 = vector.broadcast %cst_84 : f32 to vector<2x256xf32>
    %391 = arith.addf %389, %390 : vector<2x256xf32>
    %392 = arith.select %38, %387, %391 : vector<2x256xi1>, vector<2x256xf32>
    %393 = vector.extract_strided_slice %392 {offsets = [0, 0], sizes = [2, 64], strides = [1, 1]} : vector<2x256xf32> to vector<2x64xf32>
    %394 = vector.extract_strided_slice %392 {offsets = [0, 64], sizes = [2, 64], strides = [1, 1]} : vector<2x256xf32> to vector<2x64xf32>
    %395 = vector.extract_strided_slice %392 {offsets = [0, 128], sizes = [2, 64], strides = [1, 1]} : vector<2x256xf32> to vector<2x64xf32>
    %396 = vector.extract_strided_slice %392 {offsets = [0, 192], sizes = [2, 64], strides = [1, 1]} : vector<2x256xf32> to vector<2x64xf32>
    %397 = arith.mulf %394, %370 : vector<2x64xf32>
    %398 = arith.mulf %393, %395 : vector<2x64xf32>
    %399 = arith.addf %397, %398 : vector<2x64xf32>
    %400 = math.tanh %399 : vector<2x64xf32>
    %401 = arith.mulf %396, %400 : vector<2x64xf32>
    %402 = vector.shape_cast %32 : vector<2x1xf32> to vector<2x1xf32>
    %403 = vector.broadcast %402 : vector<2x1xf32> to vector<2x64xf32>
    %404 = vector.shape_cast %4 : vector<2x1xf32> to vector<2x1xf32>
    %405 = vector.broadcast %404 : vector<2x1xf32> to vector<2x64xf32>
    %406 = arith.select %45, %403, %405 : vector<2x64xi1>, vector<2x64xf32>
    %407 = arith.mulf %406, %401 : vector<2x64xf32>
    %408 = vector.extract_strided_slice %407 {offsets = [0, 0], sizes = [2, 32], strides = [1, 1]} : vector<2x64xf32> to vector<2x32xf32>
    %409 = arith.truncf %408 : vector<2x32xf32> to vector<2x32xbf16>
    %c14_85 = arith.constant 14 : index
    %c0_86 = arith.constant 0 : index
    %410 = vector.load %arg5[%c14_85, %c0_86] : memref<16x64xbf16, #tpu.memory_space<vmem>>, vector<2x32xbf16>
    tpu.vector_store %arg5[%c14_85, %c0_86], %409 {strides = array<i32>} : memref<16x64xbf16, #tpu.memory_space<vmem>>, vector<2x32xbf16>,
    %411 = vector.extract_strided_slice %407 {offsets = [0, 32], sizes = [2, 32], strides = [1, 1]} : vector<2x64xf32> to vector<2x32xf32>
    %412 = arith.truncf %411 : vector<2x32xf32> to vector<2x32xbf16>
    %c0_87 = arith.constant 0 : index
    %c32_88 = arith.constant 32 : index
    %413 = vector.load %arg5[%c0_87, %c32_88] : memref<16x64xbf16, #tpu.memory_space<vmem>>, vector<2x32xbf16>
    tpu.vector_store %arg5[%c0_87, %c32_88], %412 {strides = array<i32>} : memref<16x64xbf16, #tpu.memory_space<vmem>>, vector<2x32xbf16>,
    %c0_89 = arith.constant 0 : index
    %c0_90 = arith.constant 0 : index
    %414 = vector.load %arg5[%c0_89, %c0_90] : memref<16x64xbf16, #tpu.memory_space<vmem>>, vector<16x64xbf16>
    %c112 = arith.constant 112 : index
    %c0_91 = arith.constant 0 : index
    %415 = vector.load %arg2[%c112, %c0_91] : memref<256x256xbf16, #tpu.memory_space<vmem>>, vector<64x256xbf16>
    %c176 = arith.constant 176 : index
    %c0_92 = arith.constant 0 : index
    %416 = vector.load %arg2[%c176, %c0_92] : memref<256x256xbf16, #tpu.memory_space<vmem>>, vector<64x256xbf16>
    %c240 = arith.constant 240 : index
    %c0_93 = arith.constant 0 : index
    %417 = vector.load %arg2[%c240, %c0_93] : memref<256x256xbf16, #tpu.memory_space<vmem>>, vector<1x256xbf16>
    %418 = arith.extf %417 : vector<1x256xbf16> to vector<1x256xf32>
    %cst_94 = arith.constant dense<0.000000e+00> : vector<16x256xf32>
    %419 = tpu.matmul %414, %415, %cst_94 {dimension_numbers = #tpu.dot_dimension_numbers<[1], [0], [0], [1], [0, 0, 1, 1], [], []>} : vector<16x64xbf16>, vector<64x256xbf16>, vector<16x256xf32> -> vector<16x256xf32>
    %420 = vector.broadcast %418 : vector<1x256xf32> to vector<16x256xf32>
    %421 = arith.addf %419, %420 : vector<16x256xf32>
    %cst_95 = arith.constant 0.000000e+00 : f32
    %422 = vector.broadcast %cst_95 : f32 to vector<2x64xf32>
    %cst_96 = arith.constant 0.000000e+00 : f32
    %423 = vector.broadcast %cst_96 : f32 to vector<2x64xf32>
    %424 = vector.extract_strided_slice %421 {offsets = [0, 0], sizes = [2, 256], strides = [1, 1]} : vector<16x256xf32> to vector<2x256xf32>
    %425 = vector.extract_strided_slice %421 {offsets = [14, 0], sizes = [2, 256], strides = [1, 1]} : vector<16x256xf32> to vector<2x256xf32>
    %426 = arith.select %42, %424, %425 : vector<2x256xi1>, vector<2x256xf32>
    %427 = arith.truncf %422 : vector<2x64xf32> to vector<2x64xbf16>
    %cst_97 = arith.constant dense<0.000000e+00> : vector<2x256xf32>
    %428 = tpu.matmul %427, %416, %cst_97 {dimension_numbers = #tpu.dot_dimension_numbers<[1], [0], [0], [1], [0, 0, 1, 1], [], []>} : vector<2x64xbf16>, vector<64x256xbf16>, vector<2x256xf32> -> vector<2x256xf32>
    %429 = arith.addf %426, %428 : vector<2x256xf32>
    %cst_98 = arith.constant 5.000000e-01 : f32
    %430 = vector.broadcast %cst_98 : f32 to vector<2x256xf32>
    %431 = arith.mulf %430, %429 : vector<2x256xf32>
    %432 = arith.select %38, %429, %431 : vector<2x256xi1>, vector<2x256xf32>
    %433 = math.tanh %432 : vector<2x256xf32>
    %cst_99 = arith.constant 5.000000e-01 : f32
    %434 = vector.broadcast %cst_99 : f32 to vector<2x256xf32>
    %435 = arith.mulf %434, %433 : vector<2x256xf32>
    %cst_100 = arith.constant 5.000000e-01 : f32
    %436 = vector.broadcast %cst_100 : f32 to vector<2x256xf32>
    %437 = arith.addf %435, %436 : vector<2x256xf32>
    %438 = arith.select %38, %433, %437 : vector<2x256xi1>, vector<2x256xf32>
    %439 = vector.extract_strided_slice %438 {offsets = [0, 0], sizes = [2, 64], strides = [1, 1]} : vector<2x256xf32> to vector<2x64xf32>
    %440 = vector.extract_strided_slice %438 {offsets = [0, 64], sizes = [2, 64], strides = [1, 1]} : vector<2x256xf32> to vector<2x64xf32>
    %441 = vector.extract_strided_slice %438 {offsets = [0, 128], sizes = [2, 64], strides = [1, 1]} : vector<2x256xf32> to vector<2x64xf32>
    %442 = vector.extract_strided_slice %438 {offsets = [0, 192], sizes = [2, 64], strides = [1, 1]} : vector<2x256xf32> to vector<2x64xf32>
    %443 = arith.mulf %440, %423 : vector<2x64xf32>
    %444 = arith.mulf %439, %441 : vector<2x64xf32>
    %445 = arith.addf %443, %444 : vector<2x64xf32>
    %446 = math.tanh %445 : vector<2x64xf32>
    %447 = arith.mulf %442, %446 : vector<2x64xf32>
    %448 = vector.shape_cast %4 : vector<2x1xf32> to vector<2x1xf32>
    %449 = vector.broadcast %448 : vector<2x1xf32> to vector<2x64xf32>
    %450 = vector.shape_cast %32 : vector<2x1xf32> to vector<2x1xf32>
    %451 = vector.broadcast %450 : vector<2x1xf32> to vector<2x64xf32>
    %452 = arith.select %45, %449, %451 : vector<2x64xi1>, vector<2x64xf32>
    %453 = arith.mulf %452, %447 : vector<2x64xf32>
    %cst_101 = arith.constant 1.000000e+00 : f32
    %454 = vector.broadcast %cst_101 : f32 to vector<2x64xf32>
    %455 = arith.subf %454, %452 : vector<2x64xf32>
    %456 = arith.mulf %455, %422 : vector<2x64xf32>
    %457 = arith.addf %453, %456 : vector<2x64xf32>
    %458 = arith.mulf %452, %445 : vector<2x64xf32>
    %cst_102 = arith.constant 1.000000e+00 : f32
    %459 = vector.broadcast %cst_102 : f32 to vector<2x64xf32>
    %460 = arith.subf %459, %452 : vector<2x64xf32>
    %461 = arith.mulf %460, %423 : vector<2x64xf32>
    %462 = arith.addf %458, %461 : vector<2x64xf32>
    %463 = arith.mulf %452, %447 : vector<2x64xf32>
    %464 = vector.extract_strided_slice %421 {offsets = [2, 0], sizes = [2, 256], strides = [1, 1]} : vector<16x256xf32> to vector<2x256xf32>
    %465 = vector.extract_strided_slice %421 {offsets = [12, 0], sizes = [2, 256], strides = [1, 1]} : vector<16x256xf32> to vector<2x256xf32>
    %466 = arith.select %42, %464, %465 : vector<2x256xi1>, vector<2x256xf32>
    %467 = arith.truncf %457 : vector<2x64xf32> to vector<2x64xbf16>
    %cst_103 = arith.constant dense<0.000000e+00> : vector<2x256xf32>
    %468 = tpu.matmul %467, %416, %cst_103 {dimension_numbers = #tpu.dot_dimension_numbers<[1], [0], [0], [1], [0, 0, 1, 1], [], []>} : vector<2x64xbf16>, vector<64x256xbf16>, vector<2x256xf32> -> vector<2x256xf32>
    %469 = arith.addf %466, %468 : vector<2x256xf32>
    %cst_104 = arith.constant 5.000000e-01 : f32
    %470 = vector.broadcast %cst_104 : f32 to vector<2x256xf32>
    %471 = arith.mulf %470, %469 : vector<2x256xf32>
    %472 = arith.select %38, %469, %471 : vector<2x256xi1>, vector<2x256xf32>
    %473 = math.tanh %472 : vector<2x256xf32>
    %cst_105 = arith.constant 5.000000e-01 : f32
    %474 = vector.broadcast %cst_105 : f32 to vector<2x256xf32>
    %475 = arith.mulf %474, %473 : vector<2x256xf32>
    %cst_106 = arith.constant 5.000000e-01 : f32
    %476 = vector.broadcast %cst_106 : f32 to vector<2x256xf32>
    %477 = arith.addf %475, %476 : vector<2x256xf32>
    %478 = arith.select %38, %473, %477 : vector<2x256xi1>, vector<2x256xf32>
    %479 = vector.extract_strided_slice %478 {offsets = [0, 0], sizes = [2, 64], strides = [1, 1]} : vector<2x256xf32> to vector<2x64xf32>
    %480 = vector.extract_strided_slice %478 {offsets = [0, 64], sizes = [2, 64], strides = [1, 1]} : vector<2x256xf32> to vector<2x64xf32>
    %481 = vector.extract_strided_slice %478 {offsets = [0, 128], sizes = [2, 64], strides = [1, 1]} : vector<2x256xf32> to vector<2x64xf32>
    %482 = vector.extract_strided_slice %478 {offsets = [0, 192], sizes = [2, 64], strides = [1, 1]} : vector<2x256xf32> to vector<2x64xf32>
    %483 = arith.mulf %480, %462 : vector<2x64xf32>
    %484 = arith.mulf %479, %481 : vector<2x64xf32>
    %485 = arith.addf %483, %484 : vector<2x64xf32>
    %486 = math.tanh %485 : vector<2x64xf32>
    %487 = arith.mulf %482, %486 : vector<2x64xf32>
    %488 = vector.shape_cast %8 : vector<2x1xf32> to vector<2x1xf32>
    %489 = vector.broadcast %488 : vector<2x1xf32> to vector<2x64xf32>
    %490 = vector.shape_cast %28 : vector<2x1xf32> to vector<2x1xf32>
    %491 = vector.broadcast %490 : vector<2x1xf32> to vector<2x64xf32>
    %492 = arith.select %45, %489, %491 : vector<2x64xi1>, vector<2x64xf32>
    %493 = arith.mulf %492, %487 : vector<2x64xf32>
    %cst_107 = arith.constant 1.000000e+00 : f32
    %494 = vector.broadcast %cst_107 : f32 to vector<2x64xf32>
    %495 = arith.subf %494, %492 : vector<2x64xf32>
    %496 = arith.mulf %495, %457 : vector<2x64xf32>
    %497 = arith.addf %493, %496 : vector<2x64xf32>
    %498 = arith.mulf %492, %485 : vector<2x64xf32>
    %cst_108 = arith.constant 1.000000e+00 : f32
    %499 = vector.broadcast %cst_108 : f32 to vector<2x64xf32>
    %500 = arith.subf %499, %492 : vector<2x64xf32>
    %501 = arith.mulf %500, %462 : vector<2x64xf32>
    %502 = arith.addf %498, %501 : vector<2x64xf32>
    %503 = vector.extract_strided_slice %421 {offsets = [4, 0], sizes = [2, 256], strides = [1, 1]} : vector<16x256xf32> to vector<2x256xf32>
    %504 = vector.extract_strided_slice %421 {offsets = [10, 0], sizes = [2, 256], strides = [1, 1]} : vector<16x256xf32> to vector<2x256xf32>
    %505 = arith.select %42, %503, %504 : vector<2x256xi1>, vector<2x256xf32>
    %506 = arith.truncf %497 : vector<2x64xf32> to vector<2x64xbf16>
    %cst_109 = arith.constant dense<0.000000e+00> : vector<2x256xf32>
    %507 = tpu.matmul %506, %416, %cst_109 {dimension_numbers = #tpu.dot_dimension_numbers<[1], [0], [0], [1], [0, 0, 1, 1], [], []>} : vector<2x64xbf16>, vector<64x256xbf16>, vector<2x256xf32> -> vector<2x256xf32>
    %508 = arith.addf %505, %507 : vector<2x256xf32>
    %cst_110 = arith.constant 5.000000e-01 : f32
    %509 = vector.broadcast %cst_110 : f32 to vector<2x256xf32>
    %510 = arith.mulf %509, %508 : vector<2x256xf32>
    %511 = arith.select %38, %508, %510 : vector<2x256xi1>, vector<2x256xf32>
    %512 = math.tanh %511 : vector<2x256xf32>
    %cst_111 = arith.constant 5.000000e-01 : f32
    %513 = vector.broadcast %cst_111 : f32 to vector<2x256xf32>
    %514 = arith.mulf %513, %512 : vector<2x256xf32>
    %cst_112 = arith.constant 5.000000e-01 : f32
    %515 = vector.broadcast %cst_112 : f32 to vector<2x256xf32>
    %516 = arith.addf %514, %515 : vector<2x256xf32>
    %517 = arith.select %38, %512, %516 : vector<2x256xi1>, vector<2x256xf32>
    %518 = vector.extract_strided_slice %517 {offsets = [0, 0], sizes = [2, 64], strides = [1, 1]} : vector<2x256xf32> to vector<2x64xf32>
    %519 = vector.extract_strided_slice %517 {offsets = [0, 64], sizes = [2, 64], strides = [1, 1]} : vector<2x256xf32> to vector<2x64xf32>
    %520 = vector.extract_strided_slice %517 {offsets = [0, 128], sizes = [2, 64], strides = [1, 1]} : vector<2x256xf32> to vector<2x64xf32>
    %521 = vector.extract_strided_slice %517 {offsets = [0, 192], sizes = [2, 64], strides = [1, 1]} : vector<2x256xf32> to vector<2x64xf32>
    %522 = arith.mulf %519, %502 : vector<2x64xf32>
    %523 = arith.mulf %518, %520 : vector<2x64xf32>
    %524 = arith.addf %522, %523 : vector<2x64xf32>
    %525 = math.tanh %524 : vector<2x64xf32>
    %526 = arith.mulf %521, %525 : vector<2x64xf32>
    %527 = vector.shape_cast %12 : vector<2x1xf32> to vector<2x1xf32>
    %528 = vector.broadcast %527 : vector<2x1xf32> to vector<2x64xf32>
    %529 = vector.shape_cast %24 : vector<2x1xf32> to vector<2x1xf32>
    %530 = vector.broadcast %529 : vector<2x1xf32> to vector<2x64xf32>
    %531 = arith.select %45, %528, %530 : vector<2x64xi1>, vector<2x64xf32>
    %532 = arith.mulf %531, %526 : vector<2x64xf32>
    %cst_113 = arith.constant 1.000000e+00 : f32
    %533 = vector.broadcast %cst_113 : f32 to vector<2x64xf32>
    %534 = arith.subf %533, %531 : vector<2x64xf32>
    %535 = arith.mulf %534, %497 : vector<2x64xf32>
    %536 = arith.addf %532, %535 : vector<2x64xf32>
    %537 = arith.mulf %531, %524 : vector<2x64xf32>
    %cst_114 = arith.constant 1.000000e+00 : f32
    %538 = vector.broadcast %cst_114 : f32 to vector<2x64xf32>
    %539 = arith.subf %538, %531 : vector<2x64xf32>
    %540 = arith.mulf %539, %502 : vector<2x64xf32>
    %541 = arith.addf %537, %540 : vector<2x64xf32>
    %542 = vector.extract_strided_slice %421 {offsets = [6, 0], sizes = [2, 256], strides = [1, 1]} : vector<16x256xf32> to vector<2x256xf32>
    %543 = vector.extract_strided_slice %421 {offsets = [8, 0], sizes = [2, 256], strides = [1, 1]} : vector<16x256xf32> to vector<2x256xf32>
    %544 = arith.select %42, %542, %543 : vector<2x256xi1>, vector<2x256xf32>
    %545 = arith.truncf %536 : vector<2x64xf32> to vector<2x64xbf16>
    %cst_115 = arith.constant dense<0.000000e+00> : vector<2x256xf32>
    %546 = tpu.matmul %545, %416, %cst_115 {dimension_numbers = #tpu.dot_dimension_numbers<[1], [0], [0], [1], [0, 0, 1, 1], [], []>} : vector<2x64xbf16>, vector<64x256xbf16>, vector<2x256xf32> -> vector<2x256xf32>
    %547 = arith.addf %544, %546 : vector<2x256xf32>
    %cst_116 = arith.constant 5.000000e-01 : f32
    %548 = vector.broadcast %cst_116 : f32 to vector<2x256xf32>
    %549 = arith.mulf %548, %547 : vector<2x256xf32>
    %550 = arith.select %38, %547, %549 : vector<2x256xi1>, vector<2x256xf32>
    %551 = math.tanh %550 : vector<2x256xf32>
    %cst_117 = arith.constant 5.000000e-01 : f32
    %552 = vector.broadcast %cst_117 : f32 to vector<2x256xf32>
    %553 = arith.mulf %552, %551 : vector<2x256xf32>
    %cst_118 = arith.constant 5.000000e-01 : f32
    %554 = vector.broadcast %cst_118 : f32 to vector<2x256xf32>
    %555 = arith.addf %553, %554 : vector<2x256xf32>
    %556 = arith.select %38, %551, %555 : vector<2x256xi1>, vector<2x256xf32>
    %557 = vector.extract_strided_slice %556 {offsets = [0, 0], sizes = [2, 64], strides = [1, 1]} : vector<2x256xf32> to vector<2x64xf32>
    %558 = vector.extract_strided_slice %556 {offsets = [0, 64], sizes = [2, 64], strides = [1, 1]} : vector<2x256xf32> to vector<2x64xf32>
    %559 = vector.extract_strided_slice %556 {offsets = [0, 128], sizes = [2, 64], strides = [1, 1]} : vector<2x256xf32> to vector<2x64xf32>
    %560 = vector.extract_strided_slice %556 {offsets = [0, 192], sizes = [2, 64], strides = [1, 1]} : vector<2x256xf32> to vector<2x64xf32>
    %561 = arith.mulf %558, %541 : vector<2x64xf32>
    %562 = arith.mulf %557, %559 : vector<2x64xf32>
    %563 = arith.addf %561, %562 : vector<2x64xf32>
    %564 = math.tanh %563 : vector<2x64xf32>
    %565 = arith.mulf %560, %564 : vector<2x64xf32>
    %566 = vector.shape_cast %16 : vector<2x1xf32> to vector<2x1xf32>
    %567 = vector.broadcast %566 : vector<2x1xf32> to vector<2x64xf32>
    %568 = vector.shape_cast %20 : vector<2x1xf32> to vector<2x1xf32>
    %569 = vector.broadcast %568 : vector<2x1xf32> to vector<2x64xf32>
    %570 = arith.select %45, %567, %569 : vector<2x64xi1>, vector<2x64xf32>
    %571 = arith.mulf %570, %565 : vector<2x64xf32>
    %cst_119 = arith.constant 1.000000e+00 : f32
    %572 = vector.broadcast %cst_119 : f32 to vector<2x64xf32>
    %573 = arith.subf %572, %570 : vector<2x64xf32>
    %574 = arith.mulf %573, %536 : vector<2x64xf32>
    %575 = arith.addf %571, %574 : vector<2x64xf32>
    %576 = arith.mulf %570, %563 : vector<2x64xf32>
    %cst_120 = arith.constant 1.000000e+00 : f32
    %577 = vector.broadcast %cst_120 : f32 to vector<2x64xf32>
    %578 = arith.subf %577, %570 : vector<2x64xf32>
    %579 = arith.mulf %578, %541 : vector<2x64xf32>
    %580 = arith.addf %576, %579 : vector<2x64xf32>
    %581 = vector.extract_strided_slice %421 {offsets = [8, 0], sizes = [2, 256], strides = [1, 1]} : vector<16x256xf32> to vector<2x256xf32>
    %582 = vector.extract_strided_slice %421 {offsets = [6, 0], sizes = [2, 256], strides = [1, 1]} : vector<16x256xf32> to vector<2x256xf32>
    %583 = arith.select %42, %581, %582 : vector<2x256xi1>, vector<2x256xf32>
    %584 = arith.truncf %575 : vector<2x64xf32> to vector<2x64xbf16>
    %cst_121 = arith.constant dense<0.000000e+00> : vector<2x256xf32>
    %585 = tpu.matmul %584, %416, %cst_121 {dimension_numbers = #tpu.dot_dimension_numbers<[1], [0], [0], [1], [0, 0, 1, 1], [], []>} : vector<2x64xbf16>, vector<64x256xbf16>, vector<2x256xf32> -> vector<2x256xf32>
    %586 = arith.addf %583, %585 : vector<2x256xf32>
    %cst_122 = arith.constant 5.000000e-01 : f32
    %587 = vector.broadcast %cst_122 : f32 to vector<2x256xf32>
    %588 = arith.mulf %587, %586 : vector<2x256xf32>
    %589 = arith.select %38, %586, %588 : vector<2x256xi1>, vector<2x256xf32>
    %590 = math.tanh %589 : vector<2x256xf32>
    %cst_123 = arith.constant 5.000000e-01 : f32
    %591 = vector.broadcast %cst_123 : f32 to vector<2x256xf32>
    %592 = arith.mulf %591, %590 : vector<2x256xf32>
    %cst_124 = arith.constant 5.000000e-01 : f32
    %593 = vector.broadcast %cst_124 : f32 to vector<2x256xf32>
    %594 = arith.addf %592, %593 : vector<2x256xf32>
    %595 = arith.select %38, %590, %594 : vector<2x256xi1>, vector<2x256xf32>
    %596 = vector.extract_strided_slice %595 {offsets = [0, 0], sizes = [2, 64], strides = [1, 1]} : vector<2x256xf32> to vector<2x64xf32>
    %597 = vector.extract_strided_slice %595 {offsets = [0, 64], sizes = [2, 64], strides = [1, 1]} : vector<2x256xf32> to vector<2x64xf32>
    %598 = vector.extract_strided_slice %595 {offsets = [0, 128], sizes = [2, 64], strides = [1, 1]} : vector<2x256xf32> to vector<2x64xf32>
    %599 = vector.extract_strided_slice %595 {offsets = [0, 192], sizes = [2, 64], strides = [1, 1]} : vector<2x256xf32> to vector<2x64xf32>
    %600 = arith.mulf %597, %580 : vector<2x64xf32>
    %601 = arith.mulf %596, %598 : vector<2x64xf32>
    %602 = arith.addf %600, %601 : vector<2x64xf32>
    %603 = math.tanh %602 : vector<2x64xf32>
    %604 = arith.mulf %599, %603 : vector<2x64xf32>
    %605 = vector.shape_cast %20 : vector<2x1xf32> to vector<2x1xf32>
    %606 = vector.broadcast %605 : vector<2x1xf32> to vector<2x64xf32>
    %607 = vector.shape_cast %16 : vector<2x1xf32> to vector<2x1xf32>
    %608 = vector.broadcast %607 : vector<2x1xf32> to vector<2x64xf32>
    %609 = arith.select %45, %606, %608 : vector<2x64xi1>, vector<2x64xf32>
    %610 = arith.mulf %609, %604 : vector<2x64xf32>
    %cst_125 = arith.constant 1.000000e+00 : f32
    %611 = vector.broadcast %cst_125 : f32 to vector<2x64xf32>
    %612 = arith.subf %611, %609 : vector<2x64xf32>
    %613 = arith.mulf %612, %575 : vector<2x64xf32>
    %614 = arith.addf %610, %613 : vector<2x64xf32>
    %615 = arith.mulf %609, %602 : vector<2x64xf32>
    %cst_126 = arith.constant 1.000000e+00 : f32
    %616 = vector.broadcast %cst_126 : f32 to vector<2x64xf32>
    %617 = arith.subf %616, %609 : vector<2x64xf32>
    %618 = arith.mulf %617, %580 : vector<2x64xf32>
    %619 = arith.addf %615, %618 : vector<2x64xf32>
    %620 = vector.extract_strided_slice %421 {offsets = [10, 0], sizes = [2, 256], strides = [1, 1]} : vector<16x256xf32> to vector<2x256xf32>
    %621 = vector.extract_strided_slice %421 {offsets = [4, 0], sizes = [2, 256], strides = [1, 1]} : vector<16x256xf32> to vector<2x256xf32>
    %622 = arith.select %42, %620, %621 : vector<2x256xi1>, vector<2x256xf32>
    %623 = arith.truncf %614 : vector<2x64xf32> to vector<2x64xbf16>
    %cst_127 = arith.constant dense<0.000000e+00> : vector<2x256xf32>
    %624 = tpu.matmul %623, %416, %cst_127 {dimension_numbers = #tpu.dot_dimension_numbers<[1], [0], [0], [1], [0, 0, 1, 1], [], []>} : vector<2x64xbf16>, vector<64x256xbf16>, vector<2x256xf32> -> vector<2x256xf32>
    %625 = arith.addf %622, %624 : vector<2x256xf32>
    %cst_128 = arith.constant 5.000000e-01 : f32
    %626 = vector.broadcast %cst_128 : f32 to vector<2x256xf32>
    %627 = arith.mulf %626, %625 : vector<2x256xf32>
    %628 = arith.select %38, %625, %627 : vector<2x256xi1>, vector<2x256xf32>
    %629 = math.tanh %628 : vector<2x256xf32>
    %cst_129 = arith.constant 5.000000e-01 : f32
    %630 = vector.broadcast %cst_129 : f32 to vector<2x256xf32>
    %631 = arith.mulf %630, %629 : vector<2x256xf32>
    %cst_130 = arith.constant 5.000000e-01 : f32
    %632 = vector.broadcast %cst_130 : f32 to vector<2x256xf32>
    %633 = arith.addf %631, %632 : vector<2x256xf32>
    %634 = arith.select %38, %629, %633 : vector<2x256xi1>, vector<2x256xf32>
    %635 = vector.extract_strided_slice %634 {offsets = [0, 0], sizes = [2, 64], strides = [1, 1]} : vector<2x256xf32> to vector<2x64xf32>
    %636 = vector.extract_strided_slice %634 {offsets = [0, 64], sizes = [2, 64], strides = [1, 1]} : vector<2x256xf32> to vector<2x64xf32>
    %637 = vector.extract_strided_slice %634 {offsets = [0, 128], sizes = [2, 64], strides = [1, 1]} : vector<2x256xf32> to vector<2x64xf32>
    %638 = vector.extract_strided_slice %634 {offsets = [0, 192], sizes = [2, 64], strides = [1, 1]} : vector<2x256xf32> to vector<2x64xf32>
    %639 = arith.mulf %636, %619 : vector<2x64xf32>
    %640 = arith.mulf %635, %637 : vector<2x64xf32>
    %641 = arith.addf %639, %640 : vector<2x64xf32>
    %642 = math.tanh %641 : vector<2x64xf32>
    %643 = arith.mulf %638, %642 : vector<2x64xf32>
    %644 = vector.shape_cast %24 : vector<2x1xf32> to vector<2x1xf32>
    %645 = vector.broadcast %644 : vector<2x1xf32> to vector<2x64xf32>
    %646 = vector.shape_cast %12 : vector<2x1xf32> to vector<2x1xf32>
    %647 = vector.broadcast %646 : vector<2x1xf32> to vector<2x64xf32>
    %648 = arith.select %45, %645, %647 : vector<2x64xi1>, vector<2x64xf32>
    %649 = arith.mulf %648, %643 : vector<2x64xf32>
    %cst_131 = arith.constant 1.000000e+00 : f32
    %650 = vector.broadcast %cst_131 : f32 to vector<2x64xf32>
    %651 = arith.subf %650, %648 : vector<2x64xf32>
    %652 = arith.mulf %651, %614 : vector<2x64xf32>
    %653 = arith.addf %649, %652 : vector<2x64xf32>
    %654 = arith.mulf %648, %641 : vector<2x64xf32>
    %cst_132 = arith.constant 1.000000e+00 : f32
    %655 = vector.broadcast %cst_132 : f32 to vector<2x64xf32>
    %656 = arith.subf %655, %648 : vector<2x64xf32>
    %657 = arith.mulf %656, %619 : vector<2x64xf32>
    %658 = arith.addf %654, %657 : vector<2x64xf32>
    %659 = vector.extract_strided_slice %421 {offsets = [12, 0], sizes = [2, 256], strides = [1, 1]} : vector<16x256xf32> to vector<2x256xf32>
    %660 = vector.extract_strided_slice %421 {offsets = [2, 0], sizes = [2, 256], strides = [1, 1]} : vector<16x256xf32> to vector<2x256xf32>
    %661 = arith.select %42, %659, %660 : vector<2x256xi1>, vector<2x256xf32>
    %662 = arith.truncf %653 : vector<2x64xf32> to vector<2x64xbf16>
    %cst_133 = arith.constant dense<0.000000e+00> : vector<2x256xf32>
    %663 = tpu.matmul %662, %416, %cst_133 {dimension_numbers = #tpu.dot_dimension_numbers<[1], [0], [0], [1], [0, 0, 1, 1], [], []>} : vector<2x64xbf16>, vector<64x256xbf16>, vector<2x256xf32> -> vector<2x256xf32>
    %664 = arith.addf %661, %663 : vector<2x256xf32>
    %cst_134 = arith.constant 5.000000e-01 : f32
    %665 = vector.broadcast %cst_134 : f32 to vector<2x256xf32>
    %666 = arith.mulf %665, %664 : vector<2x256xf32>
    %667 = arith.select %38, %664, %666 : vector<2x256xi1>, vector<2x256xf32>
    %668 = math.tanh %667 : vector<2x256xf32>
    %cst_135 = arith.constant 5.000000e-01 : f32
    %669 = vector.broadcast %cst_135 : f32 to vector<2x256xf32>
    %670 = arith.mulf %669, %668 : vector<2x256xf32>
    %cst_136 = arith.constant 5.000000e-01 : f32
    %671 = vector.broadcast %cst_136 : f32 to vector<2x256xf32>
    %672 = arith.addf %670, %671 : vector<2x256xf32>
    %673 = arith.select %38, %668, %672 : vector<2x256xi1>, vector<2x256xf32>
    %674 = vector.extract_strided_slice %673 {offsets = [0, 0], sizes = [2, 64], strides = [1, 1]} : vector<2x256xf32> to vector<2x64xf32>
    %675 = vector.extract_strided_slice %673 {offsets = [0, 64], sizes = [2, 64], strides = [1, 1]} : vector<2x256xf32> to vector<2x64xf32>
    %676 = vector.extract_strided_slice %673 {offsets = [0, 128], sizes = [2, 64], strides = [1, 1]} : vector<2x256xf32> to vector<2x64xf32>
    %677 = vector.extract_strided_slice %673 {offsets = [0, 192], sizes = [2, 64], strides = [1, 1]} : vector<2x256xf32> to vector<2x64xf32>
    %678 = arith.mulf %675, %658 : vector<2x64xf32>
    %679 = arith.mulf %674, %676 : vector<2x64xf32>
    %680 = arith.addf %678, %679 : vector<2x64xf32>
    %681 = math.tanh %680 : vector<2x64xf32>
    %682 = arith.mulf %677, %681 : vector<2x64xf32>
    %683 = vector.shape_cast %28 : vector<2x1xf32> to vector<2x1xf32>
    %684 = vector.broadcast %683 : vector<2x1xf32> to vector<2x64xf32>
    %685 = vector.shape_cast %8 : vector<2x1xf32> to vector<2x1xf32>
    %686 = vector.broadcast %685 : vector<2x1xf32> to vector<2x64xf32>
    %687 = arith.select %45, %684, %686 : vector<2x64xi1>, vector<2x64xf32>
    %688 = arith.mulf %687, %682 : vector<2x64xf32>
    %cst_137 = arith.constant 1.000000e+00 : f32
    %689 = vector.broadcast %cst_137 : f32 to vector<2x64xf32>
    %690 = arith.subf %689, %687 : vector<2x64xf32>
    %691 = arith.mulf %690, %653 : vector<2x64xf32>
    %692 = arith.addf %688, %691 : vector<2x64xf32>
    %693 = arith.mulf %687, %680 : vector<2x64xf32>
    %cst_138 = arith.constant 1.000000e+00 : f32
    %694 = vector.broadcast %cst_138 : f32 to vector<2x64xf32>
    %695 = arith.subf %694, %687 : vector<2x64xf32>
    %696 = arith.mulf %695, %658 : vector<2x64xf32>
    %697 = arith.addf %693, %696 : vector<2x64xf32>
    %698 = vector.extract_strided_slice %421 {offsets = [14, 0], sizes = [2, 256], strides = [1, 1]} : vector<16x256xf32> to vector<2x256xf32>
    %699 = vector.extract_strided_slice %421 {offsets = [0, 0], sizes = [2, 256], strides = [1, 1]} : vector<16x256xf32> to vector<2x256xf32>
    %700 = arith.select %42, %698, %699 : vector<2x256xi1>, vector<2x256xf32>
    %701 = arith.truncf %692 : vector<2x64xf32> to vector<2x64xbf16>
    %cst_139 = arith.constant dense<0.000000e+00> : vector<2x256xf32>
    %702 = tpu.matmul %701, %416, %cst_139 {dimension_numbers = #tpu.dot_dimension_numbers<[1], [0], [0], [1], [0, 0, 1, 1], [], []>} : vector<2x64xbf16>, vector<64x256xbf16>, vector<2x256xf32> -> vector<2x256xf32>
    %703 = arith.addf %700, %702 : vector<2x256xf32>
    %cst_140 = arith.constant 5.000000e-01 : f32
    %704 = vector.broadcast %cst_140 : f32 to vector<2x256xf32>
    %705 = arith.mulf %704, %703 : vector<2x256xf32>
    %706 = arith.select %38, %703, %705 : vector<2x256xi1>, vector<2x256xf32>
    %707 = math.tanh %706 : vector<2x256xf32>
    %cst_141 = arith.constant 5.000000e-01 : f32
    %708 = vector.broadcast %cst_141 : f32 to vector<2x256xf32>
    %709 = arith.mulf %708, %707 : vector<2x256xf32>
    %cst_142 = arith.constant 5.000000e-01 : f32
    %710 = vector.broadcast %cst_142 : f32 to vector<2x256xf32>
    %711 = arith.addf %709, %710 : vector<2x256xf32>
    %712 = arith.select %38, %707, %711 : vector<2x256xi1>, vector<2x256xf32>
    %713 = vector.extract_strided_slice %712 {offsets = [0, 0], sizes = [2, 64], strides = [1, 1]} : vector<2x256xf32> to vector<2x64xf32>
    %714 = vector.extract_strided_slice %712 {offsets = [0, 64], sizes = [2, 64], strides = [1, 1]} : vector<2x256xf32> to vector<2x64xf32>
    %715 = vector.extract_strided_slice %712 {offsets = [0, 128], sizes = [2, 64], strides = [1, 1]} : vector<2x256xf32> to vector<2x64xf32>
    %716 = vector.extract_strided_slice %712 {offsets = [0, 192], sizes = [2, 64], strides = [1, 1]} : vector<2x256xf32> to vector<2x64xf32>
    %717 = arith.mulf %714, %697 : vector<2x64xf32>
    %718 = arith.mulf %713, %715 : vector<2x64xf32>
    %719 = arith.addf %717, %718 : vector<2x64xf32>
    %720 = math.tanh %719 : vector<2x64xf32>
    %721 = arith.mulf %716, %720 : vector<2x64xf32>
    %722 = vector.shape_cast %32 : vector<2x1xf32> to vector<2x1xf32>
    %723 = vector.broadcast %722 : vector<2x1xf32> to vector<2x64xf32>
    %724 = vector.shape_cast %4 : vector<2x1xf32> to vector<2x1xf32>
    %725 = vector.broadcast %724 : vector<2x1xf32> to vector<2x64xf32>
    %726 = arith.select %45, %723, %725 : vector<2x64xi1>, vector<2x64xf32>
    %727 = arith.mulf %726, %721 : vector<2x64xf32>
    %728 = arith.select %45, %727, %463 : vector<2x64xi1>, vector<2x64xf32>
    %cst_143 = arith.constant 0.000000e+00 : f32
    %729 = vector.broadcast %cst_143 : f32 to vector<2x64xf32>
    %730 = arith.maximumf %728, %729 : vector<2x64xf32>
    %c0_144 = arith.constant 0 : index
    %c0_145 = arith.constant 0 : index
    %731 = vector.load %arg3[%c0_144, %c0_145] : memref<65x5xf32, #tpu.memory_space<vmem>>, vector<64x5xf32>
    %cst_146 = arith.constant dense<0.000000e+00> : vector<2x5xf32>
    %732 = tpu.matmul %730, %731, %cst_146 {dimension_numbers = #tpu.dot_dimension_numbers<[1], [0], [0], [1], [0, 0, 1, 1], [], []>} : vector<2x64xf32>, vector<64x5xf32>, vector<2x5xf32> -> vector<2x5xf32>
    %c64 = arith.constant 64 : index
    %c0_147 = arith.constant 0 : index
    %733 = vector.load %arg3[%c64, %c0_147] : memref<65x5xf32, #tpu.memory_space<vmem>>, vector<1x5xf32>
    %734 = vector.broadcast %733 : vector<1x5xf32> to vector<2x5xf32>
    %735 = arith.addf %732, %734 : vector<2x5xf32>
    %c0_148 = arith.constant 0 : index
    %c0_149 = arith.constant 0 : index
    %736 = vector.load %arg4[%c0_148, %c0_149] : memref<2x5xf32, #tpu.memory_space<vmem>>, vector<2x5xf32>
    tpu.vector_store %arg4[%c0_148, %c0_149], %735 {strides = array<i32>} : memref<2x5xf32, #tpu.memory_space<vmem>>, vector<2x5xf32>,
    return
  }
}

</mosaic_0001>

<llo_original>
// kernel: tpu_custom_call.1
$region0: #{tpu_custom_call.1}
  #allocation0 [shape = 'u32[]', space=smem, size = 0x4, offset = 0x4, fixed_abs, tag = 'smem constant byte address 0x4 - core index']
  #allocation1 [shape = 'u32[72,128]{1,0:T(1,128)}', space=vmem, size = 0x9000, scoped, tag = 'internal scratch']
  #allocation2 [shape = 'bf16[16,64]{1,0:T(8,128)(2,1)}', space=vmem, size = 0x1000, scoped, tag = 'scratch operand']
  %s0 = inlined_call_operand.vmem [shape: f32[2,1], index: 0, kind: input, shape index: {}]
  %s1 = inlined_call_operand.vmem [shape: bf16[16,32], index: 1, kind: input, shape index: {}]
  %s2 = inlined_call_operand.hbm [shape: bf16[256,256], index: 2, kind: input, shape index: {}]
  %s3 = inlined_call_operand.vmem [shape: f32[65,5], index: 3, kind: input, shape index: {}]
  %s4 = inlined_call_operand.hbm [shape: f32[2,5], index: 4, kind: output, shape index: {}]
  %s5 = sld [smem:[#allocation0]]
  $region30: #{tpu_custom_call.1} parent=0
    _
  %s7 = ssub.s32 1, %s5
  %s8 = scalar_select 0, %s7, %s5
  $region1: #{tpu_custom_call.1} parent=0
    #allocation3 [shape = 'u8[131072]{0}', space=vmem, size = 0x20000, scoped, tag = 'input window, operand 2, single buffered']
    #allocation4 [shape = 's32[1]{0}', space=sflag, size = 0x4, scoped, tag = 'scoped memory for tpu_custom_call.1']
    #allocation5 [shape = 's32[1]{0}', space=sflag, size = 0x4, scoped, tag = 'scoped memory for tpu_custom_call.1']
    #allocation6 [shape = 'u8[1024]{0}', space=vmem, size = 0x400, scoped, tag = 'output window, operand 0, single buffered']
    %9 = vsyncpa [#allocation4], 0
    %10 = vsyncpa [#allocation5], 0
    // Predicated region
    $region2: #{tpu_custom_call.1} parent=1 // pred_check
      _
    $region3: #{tpu_custom_call.1} parent=1 // pred_check_branch
      %12 = sbr.rel (0) target = $region5
    $region4: #{tpu_custom_call.1} parent=1 // pred_region
      _
    $region5: #{tpu_custom_call.1} parent=1 // pred_fallthru
      _
    // Predicated region
    $region6: #{tpu_custom_call.1} parent=1 // pred_check
      _
    $region7: #{tpu_custom_call.1} parent=1 // pred_check_branch
      %14 = sbr.rel (0) target = $region9
    $region8: #{tpu_custom_call.1} parent=1 // pred_region
      _
    $region9: #{tpu_custom_call.1} parent=1 // pred_fallthru
      _
    // Predicated region
    $region10: #{tpu_custom_call.1} parent=1 // pred_check
      _
    $region11: #{tpu_custom_call.1} parent=1 // pred_check_branch
      %16 = sbr.rel (0) target = $region13
    $region12: #{tpu_custom_call.1} parent=1 // pred_region
      %18 = vsyncadd [#allocation4], 0
      %s19 = sshll.u32 %s2, 4
      %s20 = int_to_ptr.hbm [resolvable:$true] %s19
      %s21 = sshll.u32 [#allocation3], 4
      %s22 = int_to_ptr.vmem [resolvable:$true] %s21
      %27 = dma.hbm_to_vmem [thread:$0]  %s20, 4096, %s22, [#allocation4], 128, 128, 8
    $region13: #{tpu_custom_call.1} parent=1 // pred_fallthru
      _
    // Predicated region
    $region14: #{tpu_custom_call.1} parent=1 // pred_check
      _
    $region15: #{tpu_custom_call.1} parent=1 // pred_check_branch
      %29 = sbr.rel (0) target = $region17
    $region16: #{tpu_custom_call.1} parent=1 // pred_region
      _
    $region17: #{tpu_custom_call.1} parent=1 // pred_fallthru
      _
    // Predicated region
    $region18: #{tpu_custom_call.1} parent=1 // pred_check
      _
    $region19: #{tpu_custom_call.1} parent=1 // pred_check_branch
      %31 = sbr.rel (0) target = $region21
    $region20: #{tpu_custom_call.1} parent=1 // pred_region
      %33 = dma.done [#allocation4], 4096
    $region21: #{tpu_custom_call.1} parent=1 // pred_fallthru
      _
    %v35 = vld [vmem:[%s0] sm:$0x3]
    %vm36 = vcmp.gt.f32.partialorder %v35, 0.0
    %v37 = vsel %vm36, 1, 0
    %v38 = vcvt.s32.f32 %v37
    %vm39 = vcmp.gt.f32.partialorder %v35, 1.0
    %v40 = vsel %vm39, 1, 0
    %v41 = vcvt.s32.f32 %v40
    %vm42 = vcmp.gt.f32.partialorder %v35, 2.0
    %v43 = vsel %vm42, 1, 0
    %v44 = vcvt.s32.f32 %v43
    %vm45 = vcmp.gt.f32.partialorder %v35, 3.0
    %v46 = vsel %vm45, 1, 0
    %v47 = vcvt.s32.f32 %v46
    %vm48 = vcmp.gt.f32.partialorder %v35, 4.0
    %v49 = vsel %vm48, 1, 0
    %v50 = vcvt.s32.f32 %v49
    %vm51 = vcmp.gt.f32.partialorder %v35, 5.0
    %v52 = vsel %vm51, 1, 0
    %v53 = vcvt.s32.f32 %v52
    %vm54 = vcmp.gt.f32.partialorder %v35, 6.0
    %v55 = vsel %vm54, 1, 0
    %v56 = vcvt.s32.f32 %v55
    %vm57 = vcmp.gt.f32.partialorder %v35, 7.0
    %v58 = vsel %vm57, 1, 0
    %v59 = vcvt.s32.f32 %v58
    %v60 = vlaneseq
    %v61 = vand.u32 %v60, 127
    %v62 = vadd.s32 %v61, 128
    %vm63 = vcmp.ge.s32.totalorder %v61, 128
    %vm64 = vcmp.ge.s32.totalorder %v62, 128
    %vm65 = vcmp.lt.s32.totalorder %v61, 192
    %vm66 = vcmp.lt.s32.totalorder %v62, 192
    %vm67 = vmand %vm63, %vm65
    %vm68 = vmand %vm64, %vm66
    %v69 = vand.u32 %v61, 32
    %v70 = vand.u32 %v62, 32
    %vm71 = vcmp.eq.s32.totalorder %v69, 0
    %vm72 = vcmp.eq.s32.totalorder %v70, 0
    %vm73 = vcmp.lt.s32.totalorder %v61, 32
    %v74 = vld [vmem:[%s1] sm:$0xf]
    %v75 = vld [vmem:[%s1 + $0x4] sm:$0xf]
    %v76 = vld [vmem:[#allocation3] sm:$0xff]
    %v77 = vld [vmem:[#allocation3 + $0x8] sm:$0xff]
    %v78 = vld [vmem:[#allocation3 + $0x10] sm:$0xff]
    %v79 = vld [vmem:[#allocation3 + $0x18] sm:$0xff]
    %v80 = vld [vmem:[#allocation3 + $0x20] sm:$0xff]
    %v81 = vld [vmem:[#allocation3 + $0x28] sm:$0xff]
    %v82 = vld [vmem:[#allocation3 + $0x30] sm:$0xff]
    %v83 = vld [vmem:[#allocation3 + $0x38] sm:$0xff]
    %v84 = vld [vmem:[#allocation3 + $0x40] sm:$0xff]
    %v85 = vld [vmem:[#allocation3 + $0x48] sm:$0xff]
    %v86 = vld [vmem:[#allocation3 + $0x50] sm:$0xff]
    %v87 = vld [vmem:[#allocation3 + $0x58] sm:$0xff]
    %v88 = vld [vmem:[#allocation3 + $0x60] sm:$0x11]
    %v89 = vunpack.c.l.bf16 %v88
    %v90 = vunpack.c.h.bf16 %v88
    %v91 = vperm.slane %v89, 0
    %v92 = vperm.slane %v90, 0
    %v95 = vunpack.c.l.b16 %v74
    %v96 = vunpack.c.l.b16 %v75
    %v97 = vpack.c.b16 %v96, %v95
    %v102 = vunpack.c.l.b16 %v76
    %v103 = vunpack.c.h.b16 %v76
    %v104 = vunpack.c.l.b16 %v77
    %v105 = vunpack.c.h.b16 %v77
    %v106 = vunpack.c.l.b16 %v78
    %v107 = vunpack.c.h.b16 %v78
    %v108 = vunpack.c.l.b16 %v79
    %v109 = vunpack.c.h.b16 %v79
    %v110 = vpack.c.b16 %v104, %v102
    %v111 = vpack.c.b16 %v105, %v103
    %v112 = vpack.c.b16 %v108, %v106
    %v113 = vpack.c.b16 %v109, %v107
    %vm118 = vcmask 261120
    %v120 = vsel %vm118, %v97, 0
    %122 = vmatpush.bf16.msra.mxu0 0
    %123 = vmatpush.bf16.msra.mxu0 0
    %124 = vmatpush.bf16.msra.mxu0 0
    %125 = vmatpush.bf16.msra.mxu0 0
    %126 = vmatpush.bf16.msra.mxu0 0
    %127 = vmatpush.bf16.msra.mxu0 0
    %128 = vmatpush.bf16.msra.mxu0 %v112
    %129 = vmatpush.bf16.msra.mxu0 %v110
    %130 = vmatmul.bf16.gmra.mxu0 %v120
    %v131 = vpop.f32.mrf.mxu0
    %v132 = vadd.f32 %v91, %v131
    %v133 = vpop.f32.mrf.mxu0
    %v134 = vadd.f32 %v91, %v133
    %135 = vdwg.mxu0
    %136 = vmatpush.bf16.msra.mxu0 0
    %137 = vmatpush.bf16.msra.mxu0 0
    %138 = vmatpush.bf16.msra.mxu0 0
    %139 = vmatpush.bf16.msra.mxu0 0
    %140 = vmatpush.bf16.msra.mxu0 0
    %141 = vmatpush.bf16.msra.mxu0 0
    %142 = vmatpush.bf16.msra.mxu0 %v113
    %143 = vmatpush.bf16.msra.mxu0 %v111
    %144 = vmatmul.bf16.gmra.mxu0 %v120
    %v145 = vpop.f32.mrf.mxu0
    %v146 = vadd.f32 %v92, %v145
    %v147 = vpop.f32.mrf.mxu0
    %v148 = vadd.f32 %v92, %v147
    %149 = vdwg.mxu0
    %v152 = vrot.slane %v134, 6
    %v153 = vrot.slane %v148, 6
    %v156 = vsel %vm71, %v132, %v152
    %v157 = vsel %vm72, %v146, %v153
    %v166 = vunpack.c.l.b16 %v80
    %v167 = vunpack.c.h.b16 %v80
    %v168 = vunpack.c.l.b16 %v81
    %v169 = vunpack.c.h.b16 %v81
    %v170 = vunpack.c.l.b16 %v82
    %v171 = vunpack.c.h.b16 %v82
    %v172 = vunpack.c.l.b16 %v83
    %v173 = vunpack.c.h.b16 %v83
    %v174 = vunpack.c.l.b16 %v84
    %v175 = vunpack.c.h.b16 %v84
    %v176 = vunpack.c.l.b16 %v85
    %v177 = vunpack.c.h.b16 %v85
    %v178 = vunpack.c.l.b16 %v86
    %v179 = vunpack.c.h.b16 %v86
    %v180 = vunpack.c.l.b16 %v87
    %v181 = vunpack.c.h.b16 %v87
    %v182 = vpack.c.b16 %v168, %v166
    %v183 = vpack.c.b16 %v169, %v167
    %v184 = vpack.c.b16 %v172, %v170
    %v185 = vpack.c.b16 %v173, %v171
    %v186 = vpack.c.b16 %v176, %v174
    %v187 = vpack.c.b16 %v177, %v175
    %v188 = vpack.c.b16 %v180, %v178
    %v189 = vpack.c.b16 %v181, %v179
    %vm198 = vcmask 523264
    %v200 = vsel %vm198, 0, 0
    %202 = vmatpush.bf16.msra.mxu0 0
    %203 = vmatpush.bf16.msra.mxu0 0
    %204 = vmatpush.bf16.msra.mxu0 0
    %205 = vmatpush.bf16.msra.mxu0 0
    %206 = vmatpush.bf16.msra.mxu0 %v188
    %207 = vmatpush.bf16.msra.mxu0 %v186
    %208 = vmatpush.bf16.msra.mxu0 %v184
    %209 = vmatpush.bf16.msra.mxu0 %v182
    %210 = vmatmul.bf16.gmra.mxu0 %v200
    %v211 = vpop.f32.mrf.mxu0
    %v212 = vadd.f32 0.0, %v211
    %v213 = vpop.f32.mrf.mxu0
    %214 = vdwg.mxu0
    %215 = vmatpush.bf16.msra.mxu0 0
    %216 = vmatpush.bf16.msra.mxu0 0
    %217 = vmatpush.bf16.msra.mxu0 0
    %218 = vmatpush.bf16.msra.mxu0 0
    %219 = vmatpush.bf16.msra.mxu0 %v189
    %220 = vmatpush.bf16.msra.mxu0 %v187
    %221 = vmatpush.bf16.msra.mxu0 %v185
    %222 = vmatpush.bf16.msra.mxu0 %v183
    %223 = vmatmul.bf16.gmra.mxu0 %v200
    %v224 = vpop.f32.mrf.mxu0
    %v225 = vadd.f32 0.0, %v224
    %v226 = vpop.f32.mrf.mxu0
    %227 = vdwg.mxu0
    %v228 = vadd.f32 %v156, %v212
    %v229 = vadd.f32 %v157, %v225
    %v230 = vmul.f32 %v228, 0.5
    %v231 = vmul.f32 %v229, 0.5
    %v232 = vsel %vm67, %v228, %v230
    %v233 = vsel %vm68, %v229, %v231
    %v234 = vtanh.pop %v232
    %v235 = vtanh.pop %v233
    %v236 = vmul.f32 %v234, 0.5
    %v237 = vmul.f32 %v235, 0.5
    %v238 = vadd.f32 %v236, 0.5
    %v239 = vadd.f32 %v237, 0.5
    %v240 = vsel %vm67, %v234, %v238
    %v241 = vsel %vm68, %v235, %v239
    %v242 = vmul.f32 %v240, 0.0
    %v243 = vmul.f32 %v240, %v241
    %245 = vrot.lane.b32.xlu0 %v243, 64
    %v246 = vpop.permute.xlu0 %245
    %v248 = vadd.f32 %v242, %v246
    %v249 = vtanh.pop %v248
    %v250 = vmul.f32 %v241, %v249
    %252 = vset.pattern.permute.xlu0 0
    %253 = vperm.xlu0 %252, %v38
    %v254 = vpop.permute.xlu0 %253
    %257 = vset.pattern.permute.xlu0 0
    %258 = vperm.xlu0 %257, %v59
    %v259 = vpop.permute.xlu0 %258
    %v261 = vsel %vm73, %v254, %v259
    %263 = vrot.lane.b32.xlu0 %v250, 64
    %v264 = vpop.permute.xlu0 %263
    %v266 = vmul.f32 %v261, %v264
    %v267 = vsub.f32 1.0, %v261
    %v268 = vmul.f32 %v267, 0.0
    %v269 = vadd.f32 %v266, %v268
    %271 = vrot.lane.b32.xlu0 %v248, 64
    %v272 = vpop.permute.xlu0 %271
    %v274 = vmul.f32 %v261, %v272
    %v275 = vadd.f32 %v274, %v268
    %v276 = vpack.c.bf16 %v266, %v266
    %vm277 = vcmask 253952
    %278 = vst.msk [vmem:[#allocation2] sm:$0x1] %vm277, %v276
    %v280 = vrot.slane %v276, 5
    %vm282 = vcmask 519427
    %283 = vst.msk [vmem:[#allocation2 + $0x4] sm:$0x8] %vm282, %v280
    %v284 = vrot.slane %v134, 2
    %v285 = vrot.slane %v148, 2
    %v288 = vsel %vm71, %v132, %v284
    %v289 = vsel %vm72, %v146, %v285
    %v290 = vpack.c.bf16 %v269, %v269
    %v292 = vsel %vm198, %v290, 0
    %294 = vmatpush.bf16.msra.mxu0 0
    %295 = vmatpush.bf16.msra.mxu0 0
    %296 = vmatpush.bf16.msra.mxu0 0
    %297 = vmatpush.bf16.msra.mxu0 0
    %298 = vmatpush.bf16.msra.mxu0 %v188
    %299 = vmatpush.bf16.msra.mxu0 %v186
    %300 = vmatpush.bf16.msra.mxu0 %v184
    %301 = vmatpush.bf16.msra.mxu0 %v182
    %302 = vmatmul.bf16.gmra.mxu0 %v292
    %v303 = vpop.f32.mrf.mxu0
    %v304 = vadd.f32 0.0, %v303
    %v305 = vpop.f32.mrf.mxu0
    %306 = vdwg.mxu0
    %307 = vmatpush.bf16.msra.mxu0 0
    %308 = vmatpush.bf16.msra.mxu0 0
    %309 = vmatpush.bf16.msra.mxu0 0
    %310 = vmatpush.bf16.msra.mxu0 0
    %311 = vmatpush.bf16.msra.mxu0 %v189
    %312 = vmatpush.bf16.msra.mxu0 %v187
    %313 = vmatpush.bf16.msra.mxu0 %v185
    %314 = vmatpush.bf16.msra.mxu0 %v183
    %315 = vmatmul.bf16.gmra.mxu0 %v292
    %v316 = vpop.f32.mrf.mxu0
    %v317 = vadd.f32 0.0, %v316
    %v318 = vpop.f32.mrf.mxu0
    %319 = vdwg.mxu0
    %v322 = vrot.slane %v304, 6
    %v323 = vrot.slane %v317, 6
    %v326 = vadd.f32 %v288, %v322
    %v327 = vadd.f32 %v289, %v323
    %v328 = vmul.f32 %v326, 0.5
    %v329 = vmul.f32 %v327, 0.5
    %v330 = vsel %vm67, %v326, %v328
    %v331 = vsel %vm68, %v327, %v329
    %v332 = vtanh.pop %v330
    %v333 = vtanh.pop %v331
    %v334 = vmul.f32 %v332, 0.5
    %v335 = vmul.f32 %v333, 0.5
    %v336 = vadd.f32 %v334, 0.5
    %v337 = vadd.f32 %v335, 0.5
    %v338 = vsel %vm67, %v332, %v336
    %v339 = vsel %vm68, %v333, %v337
    %v341 = vrot.slane %v275, 6
    %342 = vrot.lane.b32.xlu0 %v341, 64
    %v343 = vpop.permute.xlu0 %342
    %v345 = vmul.f32 %v338, %v343
    %v346 = vmul.f32 %v338, %v339
    %348 = vrot.lane.b32.xlu0 %v346, 64
    %v349 = vpop.permute.xlu0 %348
    %v351 = vadd.f32 %v345, %v349
    %v352 = vtanh.pop %v351
    %v353 = vmul.f32 %v339, %v352
    %355 = vset.pattern.permute.xlu0 0
    %356 = vperm.xlu0 %355, %v41
    %v357 = vpop.permute.xlu0 %356
    %360 = vset.pattern.permute.xlu0 0
    %361 = vperm.xlu0 %360, %v56
    %v362 = vpop.permute.xlu0 %361
    %v364 = vsel %vm73, %v357, %v362
    %v366 = vrot.slane %v353, 2
    %367 = vrot.lane.b32.xlu0 %v366, 64
    %v368 = vpop.permute.xlu0 %367
    %v370 = vmul.f32 %v364, %v368
    %v371 = vsub.f32 1.0, %v364
    %v372 = vmul.f32 %v371, %v269
    %v373 = vadd.f32 %v370, %v372
    %v375 = vrot.slane %v351, 2
    %376 = vrot.lane.b32.xlu0 %v375, 64
    %v377 = vpop.permute.xlu0 %376
    %v379 = vmul.f32 %v364, %v377
    %v380 = vmul.f32 %v371, %v275
    %v381 = vadd.f32 %v379, %v380
    %v382 = vpack.c.bf16 %v370, %v370
    %v384 = vrot.slane %v382, 7
    %vm386 = vcmask 254977
    %387 = vst.msk [vmem:[#allocation2] sm:$0x2] %vm386, %v384
    %v388 = vrot.slane %v382, 6
    %vm390 = vcmask 518402
    %391 = vst.msk [vmem:[#allocation2 + $0x4] sm:$0x4] %vm390, %v388
    %v392 = vpack.c.bf16 %v373, %v373
    %v394 = vsel %vm198, %v392, 0
    %396 = vmatpush.bf16.msra.mxu0 0
    %397 = vmatpush.bf16.msra.mxu0 0
    %398 = vmatpush.bf16.msra.mxu0 0
    %399 = vmatpush.bf16.msra.mxu0 0
    %400 = vmatpush.bf16.msra.mxu0 %v188
    %401 = vmatpush.bf16.msra.mxu0 %v186
    %402 = vmatpush.bf16.msra.mxu0 %v184
    %403 = vmatpush.bf16.msra.mxu0 %v182
    %404 = vmatmul.bf16.gmra.mxu0 %v394
    %v405 = vpop.f32.mrf.mxu0
    %v406 = vadd.f32 0.0, %v405
    %v407 = vpop.f32.mrf.mxu0
    %408 = vdwg.mxu0
    %409 = vmatpush.bf16.msra.mxu0 0
    %410 = vmatpush.bf16.msra.mxu0 0
    %411 = vmatpush.bf16.msra.mxu0 0
    %412 = vmatpush.bf16.msra.mxu0 0
    %413 = vmatpush.bf16.msra.mxu0 %v189
    %414 = vmatpush.bf16.msra.mxu0 %v187
    %415 = vmatpush.bf16.msra.mxu0 %v185
    %416 = vmatpush.bf16.msra.mxu0 %v183
    %417 = vmatmul.bf16.gmra.mxu0 %v394
    %v418 = vpop.f32.mrf.mxu0
    %v419 = vadd.f32 0.0, %v418
    %v420 = vpop.f32.mrf.mxu0
    %421 = vdwg.mxu0
    %v424 = vrot.slane %v406, 4
    %v425 = vrot.slane %v419, 4
    %v428 = vadd.f32 %v156, %v424
    %v429 = vadd.f32 %v157, %v425
    %v430 = vmul.f32 %v428, 0.5
    %v431 = vmul.f32 %v429, 0.5
    %v432 = vsel %vm67, %v428, %v430
    %v433 = vsel %vm68, %v429, %v431
    %v434 = vtanh.pop %v432
    %v435 = vtanh.pop %v433
    %v436 = vmul.f32 %v434, 0.5
    %v437 = vmul.f32 %v435, 0.5
    %v438 = vadd.f32 %v436, 0.5
    %v439 = vadd.f32 %v437, 0.5
    %v440 = vsel %vm67, %v434, %v438
    %v441 = vsel %vm68, %v435, %v439
    %v443 = vrot.slane %v381, 4
    %444 = vrot.lane.b32.xlu0 %v443, 64
    %v445 = vpop.permute.xlu0 %444
    %v447 = vmul.f32 %v440, %v445
    %v448 = vmul.f32 %v440, %v441
    %450 = vrot.lane.b32.xlu0 %v448, 64
    %v451 = vpop.permute.xlu0 %450
    %v453 = vadd.f32 %v447, %v451
    %v454 = vtanh.pop %v453
    %v455 = vmul.f32 %v441, %v454
    %457 = vset.pattern.permute.xlu0 0
    %458 = vperm.xlu0 %457, %v44
    %v459 = vpop.permute.xlu0 %458
    %462 = vset.pattern.permute.xlu0 0
    %463 = vperm.xlu0 %462, %v53
    %v464 = vpop.permute.xlu0 %463
    %v466 = vsel %vm73, %v459, %v464
    %v468 = vrot.slane %v455, 4
    %469 = vrot.lane.b32.xlu0 %v468, 64
    %v470 = vpop.permute.xlu0 %469
    %v472 = vmul.f32 %v466, %v470
    %v473 = vsub.f32 1.0, %v466
    %v474 = vmul.f32 %v473, %v373
    %v475 = vadd.f32 %v472, %v474
    %v477 = vrot.slane %v453, 4
    %478 = vrot.lane.b32.xlu0 %v477, 64
    %v479 = vpop.permute.xlu0 %478
    %v481 = vmul.f32 %v466, %v479
    %v482 = vmul.f32 %v473, %v381
    %v483 = vadd.f32 %v481, %v482
    %v484 = vpack.c.bf16 %v472, %v472
    %v486 = vrot.slane %v484, 6
    %vm488 = vcmask 256002
    %489 = vst.msk [vmem:[#allocation2] sm:$0x4] %vm488, %v486
    %v490 = vrot.slane %v484, 7
    %vm492 = vcmask 517377
    %493 = vst.msk [vmem:[#allocation2 + $0x4] sm:$0x2] %vm492, %v490
    %v494 = vpack.c.bf16 %v475, %v475
    %v496 = vsel %vm198, %v494, 0
    %498 = vmatpush.bf16.msra.mxu0 0
    %499 = vmatpush.bf16.msra.mxu0 0
    %500 = vmatpush.bf16.msra.mxu0 0
    %501 = vmatpush.bf16.msra.mxu0 0
    %502 = vmatpush.bf16.msra.mxu0 %v188
    %503 = vmatpush.bf16.msra.mxu0 %v186
    %504 = vmatpush.bf16.msra.mxu0 %v184
    %505 = vmatpush.bf16.msra.mxu0 %v182
    %506 = vmatmul.bf16.gmra.mxu0 %v496
    %v507 = vpop.f32.mrf.mxu0
    %v508 = vadd.f32 0.0, %v507
    %v509 = vpop.f32.mrf.mxu0
    %510 = vdwg.mxu0
    %511 = vmatpush.bf16.msra.mxu0 0
    %512 = vmatpush.bf16.msra.mxu0 0
    %513 = vmatpush.bf16.msra.mxu0 0
    %514 = vmatpush.bf16.msra.mxu0 0
    %515 = vmatpush.bf16.msra.mxu0 %v189
    %516 = vmatpush.bf16.msra.mxu0 %v187
    %517 = vmatpush.bf16.msra.mxu0 %v185
    %518 = vmatpush.bf16.msra.mxu0 %v183
    %519 = vmatmul.bf16.gmra.mxu0 %v496
    %v520 = vpop.f32.mrf.mxu0
    %v521 = vadd.f32 0.0, %v520
    %v522 = vpop.f32.mrf.mxu0
    %523 = vdwg.mxu0
    %v526 = vrot.slane %v508, 2
    %v527 = vrot.slane %v521, 2
    %v530 = vadd.f32 %v288, %v526
    %v531 = vadd.f32 %v289, %v527
    %v532 = vmul.f32 %v530, 0.5
    %v533 = vmul.f32 %v531, 0.5
    %v534 = vsel %vm67, %v530, %v532
    %v535 = vsel %vm68, %v531, %v533
    %v536 = vtanh.pop %v534
    %v537 = vtanh.pop %v535
    %v538 = vmul.f32 %v536, 0.5
    %v539 = vmul.f32 %v537, 0.5
    %v540 = vadd.f32 %v538, 0.5
    %v541 = vadd.f32 %v539, 0.5
    %v542 = vsel %vm67, %v536, %v540
    %v543 = vsel %vm68, %v537, %v541
    %v545 = vrot.slane %v483, 2
    %546 = vrot.lane.b32.xlu0 %v545, 64
    %v547 = vpop.permute.xlu0 %546
    %v549 = vmul.f32 %v542, %v547
    %v550 = vmul.f32 %v542, %v543
    %552 = vrot.lane.b32.xlu0 %v550, 64
    %v553 = vpop.permute.xlu0 %552
    %v555 = vadd.f32 %v549, %v553
    %v556 = vtanh.pop %v555
    %v557 = vmul.f32 %v543, %v556
    %559 = vset.pattern.permute.xlu0 0
    %560 = vperm.xlu0 %559, %v47
    %v561 = vpop.permute.xlu0 %560
    %564 = vset.pattern.permute.xlu0 0
    %565 = vperm.xlu0 %564, %v50
    %v566 = vpop.permute.xlu0 %565
    %v568 = vsel %vm73, %v561, %v566
    %v570 = vrot.slane %v557, 6
    %571 = vrot.lane.b32.xlu0 %v570, 64
    %v572 = vpop.permute.xlu0 %571
    %v574 = vmul.f32 %v568, %v572
    %v575 = vsub.f32 1.0, %v568
    %v576 = vmul.f32 %v575, %v475
    %v577 = vadd.f32 %v574, %v576
    %v579 = vrot.slane %v555, 6
    %580 = vrot.lane.b32.xlu0 %v579, 64
    %v581 = vpop.permute.xlu0 %580
    %v583 = vmul.f32 %v568, %v581
    %v584 = vmul.f32 %v575, %v483
    %v585 = vadd.f32 %v583, %v584
    %v586 = vpack.c.bf16 %v574, %v574
    %v588 = vrot.slane %v586, 5
    %vm590 = vcmask 257027
    %591 = vst.msk [vmem:[#allocation2] sm:$0x8] %vm590, %v588
    %vm592 = vcmask 516352
    %593 = vst.msk [vmem:[#allocation2 + $0x4] sm:$0x1] %vm592, %v586
    %v596 = vrot.slane %v132, 6
    %v597 = vrot.slane %v146, 6
    %v600 = vsel %vm71, %v134, %v596
    %v601 = vsel %vm72, %v148, %v597
    %v602 = vpack.c.bf16 %v577, %v577
    %v604 = vsel %vm198, %v602, 0
    %606 = vmatpush.bf16.msra.mxu0 0
    %607 = vmatpush.bf16.msra.mxu0 0
    %608 = vmatpush.bf16.msra.mxu0 0
    %609 = vmatpush.bf16.msra.mxu0 0
    %610 = vmatpush.bf16.msra.mxu0 %v188
    %611 = vmatpush.bf16.msra.mxu0 %v186
    %612 = vmatpush.bf16.msra.mxu0 %v184
    %613 = vmatpush.bf16.msra.mxu0 %v182
    %614 = vmatmul.bf16.gmra.mxu0 %v604
    %v615 = vpop.f32.mrf.mxu0
    %v616 = vadd.f32 0.0, %v615
    %v617 = vpop.f32.mrf.mxu0
    %618 = vdwg.mxu0
    %619 = vmatpush.bf16.msra.mxu0 0
    %620 = vmatpush.bf16.msra.mxu0 0
    %621 = vmatpush.bf16.msra.mxu0 0
    %622 = vmatpush.bf16.msra.mxu0 0
    %623 = vmatpush.bf16.msra.mxu0 %v189
    %624 = vmatpush.bf16.msra.mxu0 %v187
    %625 = vmatpush.bf16.msra.mxu0 %v185
    %626 = vmatpush.bf16.msra.mxu0 %v183
    %627 = vmatmul.bf16.gmra.mxu0 %v604
    %v628 = vpop.f32.mrf.mxu0
    %v629 = vadd.f32 0.0, %v628
    %v630 = vpop.f32.mrf.mxu0
    %631 = vdwg.mxu0
    %v632 = vadd.f32 %v600, %v616
    %v633 = vadd.f32 %v601, %v629
    %v634 = vmul.f32 %v632, 0.5
    %v635 = vmul.f32 %v633, 0.5
    %v636 = vsel %vm67, %v632, %v634
    %v637 = vsel %vm68, %v633, %v635
    %v638 = vtanh.pop %v636
    %v639 = vtanh.pop %v637
    %v640 = vmul.f32 %v638, 0.5
    %v641 = vmul.f32 %v639, 0.5
    %v642 = vadd.f32 %v640, 0.5
    %v643 = vadd.f32 %v641, 0.5
    %v644 = vsel %vm67, %v638, %v642
    %v645 = vsel %vm68, %v639, %v643
    %647 = vrot.lane.b32.xlu0 %v585, 64
    %v648 = vpop.permute.xlu0 %647
    %v650 = vmul.f32 %v644, %v648
    %v651 = vmul.f32 %v644, %v645
    %653 = vrot.lane.b32.xlu0 %v651, 64
    %v654 = vpop.permute.xlu0 %653
    %v656 = vadd.f32 %v650, %v654
    %v657 = vtanh.pop %v656
    %v658 = vmul.f32 %v645, %v657
    %v659 = vsel %vm73, %v566, %v561
    %661 = vrot.lane.b32.xlu0 %v658, 64
    %v662 = vpop.permute.xlu0 %661
    %v664 = vmul.f32 %v659, %v662
    %v665 = vsub.f32 1.0, %v659
    %v666 = vmul.f32 %v665, %v577
    %v667 = vadd.f32 %v664, %v666
    %669 = vrot.lane.b32.xlu0 %v656, 64
    %v670 = vpop.permute.xlu0 %669
    %v672 = vmul.f32 %v659, %v670
    %v673 = vmul.f32 %v665, %v585
    %v674 = vadd.f32 %v672, %v673
    %v675 = vpack.c.bf16 %v664, %v664
    %676 = vst.msk [vmem:[#allocation2 + $0x4] sm:$0x1] %vm277, %v675
    %v678 = vrot.slane %v675, 5
    %680 = vst.msk [vmem:[#allocation2] sm:$0x8] %vm282, %v678
    %v681 = vrot.slane %v132, 2
    %v682 = vrot.slane %v146, 2
    %v685 = vsel %vm71, %v134, %v681
    %v686 = vsel %vm72, %v148, %v682
    %v687 = vpack.c.bf16 %v667, %v667
    %v689 = vsel %vm198, %v687, 0
    %691 = vmatpush.bf16.msra.mxu0 0
    %692 = vmatpush.bf16.msra.mxu0 0
    %693 = vmatpush.bf16.msra.mxu0 0
    %694 = vmatpush.bf16.msra.mxu0 0
    %695 = vmatpush.bf16.msra.mxu0 %v188
    %696 = vmatpush.bf16.msra.mxu0 %v186
    %697 = vmatpush.bf16.msra.mxu0 %v184
    %698 = vmatpush.bf16.msra.mxu0 %v182
    %699 = vmatmul.bf16.gmra.mxu0 %v689
    %v700 = vpop.f32.mrf.mxu0
    %v701 = vadd.f32 0.0, %v700
    %v702 = vpop.f32.mrf.mxu0
    %703 = vdwg.mxu0
    %704 = vmatpush.bf16.msra.mxu0 0
    %705 = vmatpush.bf16.msra.mxu0 0
    %706 = vmatpush.bf16.msra.mxu0 0
    %707 = vmatpush.bf16.msra.mxu0 0
    %708 = vmatpush.bf16.msra.mxu0 %v189
    %709 = vmatpush.bf16.msra.mxu0 %v187
    %710 = vmatpush.bf16.msra.mxu0 %v185
    %711 = vmatpush.bf16.msra.mxu0 %v183
    %712 = vmatmul.bf16.gmra.mxu0 %v689
    %v713 = vpop.f32.mrf.mxu0
    %v714 = vadd.f32 0.0, %v713
    %v715 = vpop.f32.mrf.mxu0
    %716 = vdwg.mxu0
    %v719 = vrot.slane %v701, 6
    %v720 = vrot.slane %v714, 6
    %v723 = vadd.f32 %v685, %v719
    %v724 = vadd.f32 %v686, %v720
    %v725 = vmul.f32 %v723, 0.5
    %v726 = vmul.f32 %v724, 0.5
    %v727 = vsel %vm67, %v723, %v725
    %v728 = vsel %vm68, %v724, %v726
    %v729 = vtanh.pop %v727
    %v730 = vtanh.pop %v728
    %v731 = vmul.f32 %v729, 0.5
    %v732 = vmul.f32 %v730, 0.5
    %v733 = vadd.f32 %v731, 0.5
    %v734 = vadd.f32 %v732, 0.5
    %v735 = vsel %vm67, %v729, %v733
    %v736 = vsel %vm68, %v730, %v734
    %v738 = vrot.slane %v674, 6
    %739 = vrot.lane.b32.xlu0 %v738, 64
    %v740 = vpop.permute.xlu0 %739
    %v742 = vmul.f32 %v735, %v740
    %v743 = vmul.f32 %v735, %v736
    %745 = vrot.lane.b32.xlu0 %v743, 64
    %v746 = vpop.permute.xlu0 %745
    %v748 = vadd.f32 %v742, %v746
    %v749 = vtanh.pop %v748
    %v750 = vmul.f32 %v736, %v749
    %v751 = vsel %vm73, %v464, %v459
    %v753 = vrot.slane %v750, 2
    %754 = vrot.lane.b32.xlu0 %v753, 64
    %v755 = vpop.permute.xlu0 %754
    %v757 = vmul.f32 %v751, %v755
    %v758 = vsub.f32 1.0, %v751
    %v759 = vmul.f32 %v758, %v667
    %v760 = vadd.f32 %v757, %v759
    %v762 = vrot.slane %v748, 2
    %763 = vrot.lane.b32.xlu0 %v762, 64
    %v764 = vpop.permute.xlu0 %763
    %v766 = vmul.f32 %v751, %v764
    %v767 = vmul.f32 %v758, %v674
    %v768 = vadd.f32 %v766, %v767
    %v769 = vpack.c.bf16 %v757, %v757
    %v771 = vrot.slane %v769, 7
    %773 = vst.msk [vmem:[#allocation2 + $0x4] sm:$0x2] %vm386, %v771
    %v774 = vrot.slane %v769, 6
    %776 = vst.msk [vmem:[#allocation2] sm:$0x4] %vm390, %v774
    %v777 = vpack.c.bf16 %v760, %v760
    %v779 = vsel %vm198, %v777, 0
    %781 = vmatpush.bf16.msra.mxu0 0
    %782 = vmatpush.bf16.msra.mxu0 0
    %783 = vmatpush.bf16.msra.mxu0 0
    %784 = vmatpush.bf16.msra.mxu0 0
    %785 = vmatpush.bf16.msra.mxu0 %v188
    %786 = vmatpush.bf16.msra.mxu0 %v186
    %787 = vmatpush.bf16.msra.mxu0 %v184
    %788 = vmatpush.bf16.msra.mxu0 %v182
    %789 = vmatmul.bf16.gmra.mxu0 %v779
    %v790 = vpop.f32.mrf.mxu0
    %v791 = vadd.f32 0.0, %v790
    %v792 = vpop.f32.mrf.mxu0
    %793 = vdwg.mxu0
    %794 = vmatpush.bf16.msra.mxu0 0
    %795 = vmatpush.bf16.msra.mxu0 0
    %796 = vmatpush.bf16.msra.mxu0 0
    %797 = vmatpush.bf16.msra.mxu0 0
    %798 = vmatpush.bf16.msra.mxu0 %v189
    %799 = vmatpush.bf16.msra.mxu0 %v187
    %800 = vmatpush.bf16.msra.mxu0 %v185
    %801 = vmatpush.bf16.msra.mxu0 %v183
    %802 = vmatmul.bf16.gmra.mxu0 %v779
    %v803 = vpop.f32.mrf.mxu0
    %v804 = vadd.f32 0.0, %v803
    %v805 = vpop.f32.mrf.mxu0
    %806 = vdwg.mxu0
    %v809 = vrot.slane %v791, 4
    %v810 = vrot.slane %v804, 4
    %v813 = vadd.f32 %v600, %v809
    %v814 = vadd.f32 %v601, %v810
    %v815 = vmul.f32 %v813, 0.5
    %v816 = vmul.f32 %v814, 0.5
    %v817 = vsel %vm67, %v813, %v815
    %v818 = vsel %vm68, %v814, %v816
    %v819 = vtanh.pop %v817
    %v820 = vtanh.pop %v818
    %v821 = vmul.f32 %v819, 0.5
    %v822 = vmul.f32 %v820, 0.5
    %v823 = vadd.f32 %v821, 0.5
    %v824 = vadd.f32 %v822, 0.5
    %v825 = vsel %vm67, %v819, %v823
    %v826 = vsel %vm68, %v820, %v824
    %v828 = vrot.slane %v768, 4
    %829 = vrot.lane.b32.xlu0 %v828, 64
    %v830 = vpop.permute.xlu0 %829
    %v832 = vmul.f32 %v825, %v830
    %v833 = vmul.f32 %v825, %v826
    %835 = vrot.lane.b32.xlu0 %v833, 64
    %v836 = vpop.permute.xlu0 %835
    %v838 = vadd.f32 %v832, %v836
    %v839 = vtanh.pop %v838
    %v840 = vmul.f32 %v826, %v839
    %v841 = vsel %vm73, %v362, %v357
    %v843 = vrot.slane %v840, 4
    %844 = vrot.lane.b32.xlu0 %v843, 64
    %v845 = vpop.permute.xlu0 %844
    %v847 = vmul.f32 %v841, %v845
    %v848 = vsub.f32 1.0, %v841
    %v849 = vmul.f32 %v848, %v760
    %v850 = vadd.f32 %v847, %v849
    %v852 = vrot.slane %v838, 4
    %853 = vrot.lane.b32.xlu0 %v852, 64
    %v854 = vpop.permute.xlu0 %853
    %v856 = vmul.f32 %v841, %v854
    %v857 = vmul.f32 %v848, %v768
    %v858 = vadd.f32 %v856, %v857
    %v859 = vpack.c.bf16 %v847, %v847
    %v861 = vrot.slane %v859, 6
    %863 = vst.msk [vmem:[#allocation2 + $0x4] sm:$0x4] %vm488, %v861
    %v864 = vrot.slane %v859, 7
    %866 = vst.msk [vmem:[#allocation2] sm:$0x2] %vm492, %v864
    %v867 = vpack.c.bf16 %v850, %v850
    %v869 = vsel %vm198, %v867, 0
    %871 = vmatpush.bf16.msra.mxu0 0
    %872 = vmatpush.bf16.msra.mxu0 0
    %873 = vmatpush.bf16.msra.mxu0 0
    %874 = vmatpush.bf16.msra.mxu0 0
    %875 = vmatpush.bf16.msra.mxu0 %v188
    %876 = vmatpush.bf16.msra.mxu0 %v186
    %877 = vmatpush.bf16.msra.mxu0 %v184
    %878 = vmatpush.bf16.msra.mxu0 %v182
    %879 = vmatmul.bf16.gmra.mxu0 %v869
    %v880 = vpop.f32.mrf.mxu0
    %v881 = vadd.f32 0.0, %v880
    %v882 = vpop.f32.mrf.mxu0
    %883 = vdwg.mxu0
    %884 = vmatpush.bf16.msra.mxu0 0
    %885 = vmatpush.bf16.msra.mxu0 0
    %886 = vmatpush.bf16.msra.mxu0 0
    %887 = vmatpush.bf16.msra.mxu0 0
    %888 = vmatpush.bf16.msra.mxu0 %v189
    %889 = vmatpush.bf16.msra.mxu0 %v187
    %890 = vmatpush.bf16.msra.mxu0 %v185
    %891 = vmatpush.bf16.msra.mxu0 %v183
    %892 = vmatmul.bf16.gmra.mxu0 %v869
    %v893 = vpop.f32.mrf.mxu0
    %v894 = vadd.f32 0.0, %v893
    %v895 = vpop.f32.mrf.mxu0
    %896 = vdwg.mxu0
    %v899 = vrot.slane %v881, 2
    %v900 = vrot.slane %v894, 2
    %v903 = vadd.f32 %v685, %v899
    %v904 = vadd.f32 %v686, %v900
    %v905 = vmul.f32 %v903, 0.5
    %v906 = vmul.f32 %v904, 0.5
    %v907 = vsel %vm67, %v903, %v905
    %v908 = vsel %vm68, %v904, %v906
    %v909 = vtanh.pop %v907
    %v910 = vtanh.pop %v908
    %v911 = vmul.f32 %v909, 0.5
    %v912 = vmul.f32 %v910, 0.5
    %v913 = vadd.f32 %v911, 0.5
    %v914 = vadd.f32 %v912, 0.5
    %v915 = vsel %vm67, %v909, %v913
    %v916 = vsel %vm68, %v910, %v914
    %v918 = vrot.slane %v858, 2
    %919 = vrot.lane.b32.xlu0 %v918, 64
    %v920 = vpop.permute.xlu0 %919
    %v922 = vmul.f32 %v915, %v920
    %v923 = vmul.f32 %v915, %v916
    %925 = vrot.lane.b32.xlu0 %v923, 64
    %v926 = vpop.permute.xlu0 %925
    %v928 = vadd.f32 %v922, %v926
    %v929 = vtanh.pop %v928
    %v930 = vmul.f32 %v916, %v929
    %v931 = vsel %vm73, %v259, %v254
    %v933 = vrot.slane %v930, 6
    %934 = vrot.lane.b32.xlu0 %v933, 64
    %v935 = vpop.permute.xlu0 %934
    %v937 = vmul.f32 %v931, %v935
    %v938 = vpack.c.bf16 %v937, %v937
    %v940 = vrot.slane %v938, 5
    %942 = vst.msk [vmem:[#allocation2 + $0x4] sm:$0x8] %vm590, %v940
    %943 = vst.msk [vmem:[#allocation2] sm:$0x1] %vm592, %v938
    %v944 = vld [vmem:[#allocation2] sm:$0xf]
    %v945 = vld [vmem:[#allocation2 + $0x4] sm:$0xf]
    %v946 = vld [vmem:[#allocation3 + $0x70] sm:$0xff]
    %v947 = vld [vmem:[#allocation3 + $0x78] sm:$0xff]
    %v948 = vld [vmem:[#allocation3 + $0x80] sm:$0xff]
    %v949 = vld [vmem:[#allocation3 + $0x88] sm:$0xff]
    %v950 = vld [vmem:[#allocation3 + $0x90] sm:$0xff]
    %v951 = vld [vmem:[#allocation3 + $0x98] sm:$0xff]
    %v952 = vld [vmem:[#allocation3 + $0xa0] sm:$0xff]
    %v953 = vld [vmem:[#allocation3 + $0xa8] sm:$0xff]
    %v954 = vld [vmem:[#allocation3 + $0xb0] sm:$0xff]
    %v955 = vld [vmem:[#allocation3 + $0xb8] sm:$0xff]
    %v956 = vld [vmem:[#allocation3 + $0xc0] sm:$0xff]
    %v957 = vld [vmem:[#allocation3 + $0xc8] sm:$0xff]
    %v958 = vld [vmem:[#allocation3 + $0xd0] sm:$0xff]
    %v959 = vld [vmem:[#allocation3 + $0xd8] sm:$0xff]
    %v960 = vld [vmem:[#allocation3 + $0xe0] sm:$0xff]
    %v961 = vld [vmem:[#allocation3 + $0xe8] sm:$0xff]
    %v962 = vld [vmem:[#allocation3 + $0xf0] sm:$0x11]
    %v963 = vunpack.c.l.bf16 %v962
    %v964 = vunpack.c.h.bf16 %v962
    %v965 = vperm.slane %v963, 0
    %v966 = vperm.slane %v964, 0
    %v969 = vunpack.c.l.b16 %v944
    %v970 = vunpack.c.l.b16 %v945
    %v971 = vpack.c.b16 %v970, %v969
    %v980 = vunpack.c.l.b16 %v946
    %v981 = vunpack.c.h.b16 %v946
    %v982 = vunpack.c.l.b16 %v947
    %v983 = vunpack.c.h.b16 %v947
    %v984 = vunpack.c.l.b16 %v948
    %v985 = vunpack.c.h.b16 %v948
    %v986 = vunpack.c.l.b16 %v949
    %v987 = vunpack.c.h.b16 %v949
    %v988 = vunpack.c.l.b16 %v950
    %v989 = vunpack.c.h.b16 %v950
    %v990 = vunpack.c.l.b16 %v951
    %v991 = vunpack.c.h.b16 %v951
    %v992 = vunpack.c.l.b16 %v952
    %v993 = vunpack.c.h.b16 %v952
    %v994 = vunpack.c.l.b16 %v953
    %v995 = vunpack.c.h.b16 %v953
    %v996 = vpack.c.b16 %v982, %v980
    %v997 = vpack.c.b16 %v983, %v981
    %v998 = vpack.c.b16 %v986, %v984
    %v999 = vpack.c.b16 %v987, %v985
    %v1000 = vpack.c.b16 %v990, %v988
    %v1001 = vpack.c.b16 %v991, %v989
    %v1002 = vpack.c.b16 %v994, %v992
    %v1003 = vpack.c.b16 %v995, %v993
    %v1013 = vsel %vm198, %v971, 0
    %1015 = vmatpush.bf16.msra.mxu0 0
    %1016 = vmatpush.bf16.msra.mxu0 0
    %1017 = vmatpush.bf16.msra.mxu0 0
    %1018 = vmatpush.bf16.msra.mxu0 0
    %1019 = vmatpush.bf16.msra.mxu0 %v1002
    %1020 = vmatpush.bf16.msra.mxu0 %v1000
    %1021 = vmatpush.bf16.msra.mxu0 %v998
    %1022 = vmatpush.bf16.msra.mxu0 %v996
    %1023 = vmatmul.bf16.gmra.mxu0 %v1013
    %v1024 = vpop.f32.mrf.mxu0
    %v1025 = vadd.f32 %v965, %v1024
    %v1026 = vpop.f32.mrf.mxu0
    %v1027 = vadd.f32 %v965, %v1026
    %1028 = vdwg.mxu0
    %1029 = vmatpush.bf16.msra.mxu0 0
    %1030 = vmatpush.bf16.msra.mxu0 0
    %1031 = vmatpush.bf16.msra.mxu0 0
    %1032 = vmatpush.bf16.msra.mxu0 0
    %1033 = vmatpush.bf16.msra.mxu0 %v1003
    %1034 = vmatpush.bf16.msra.mxu0 %v1001
    %1035 = vmatpush.bf16.msra.mxu0 %v999
    %1036 = vmatpush.bf16.msra.mxu0 %v997
    %1037 = vmatmul.bf16.gmra.mxu0 %v1013
    %v1038 = vpop.f32.mrf.mxu0
    %v1039 = vadd.f32 %v966, %v1038
    %v1040 = vpop.f32.mrf.mxu0
    %v1041 = vadd.f32 %v966, %v1040
    %1042 = vdwg.mxu0
    %v1045 = vrot.slane %v1027, 6
    %v1046 = vrot.slane %v1041, 6
    %v1049 = vsel %vm71, %v1025, %v1045
    %v1050 = vsel %vm72, %v1039, %v1046
    %v1059 = vunpack.c.l.b16 %v954
    %v1060 = vunpack.c.h.b16 %v954
    %v1061 = vunpack.c.l.b16 %v955
    %v1062 = vunpack.c.h.b16 %v955
    %v1063 = vunpack.c.l.b16 %v956
    %v1064 = vunpack.c.h.b16 %v956
    %v1065 = vunpack.c.l.b16 %v957
    %v1066 = vunpack.c.h.b16 %v957
    %v1067 = vunpack.c.l.b16 %v958
    %v1068 = vunpack.c.h.b16 %v958
    %v1069 = vunpack.c.l.b16 %v959
    %v1070 = vunpack.c.h.b16 %v959
    %v1071 = vunpack.c.l.b16 %v960
    %v1072 = vunpack.c.h.b16 %v960
    %v1073 = vunpack.c.l.b16 %v961
    %v1074 = vunpack.c.h.b16 %v961
    %v1075 = vpack.c.b16 %v1061, %v1059
    %v1076 = vpack.c.b16 %v1062, %v1060
    %v1077 = vpack.c.b16 %v1065, %v1063
    %v1078 = vpack.c.b16 %v1066, %v1064
    %v1079 = vpack.c.b16 %v1069, %v1067
    %v1080 = vpack.c.b16 %v1070, %v1068
    %v1081 = vpack.c.b16 %v1073, %v1071
    %v1082 = vpack.c.b16 %v1074, %v1072
    %1091 = vmatpush.bf16.msra.mxu0 0
    %1092 = vmatpush.bf16.msra.mxu0 0
    %1093 = vmatpush.bf16.msra.mxu0 0
    %1094 = vmatpush.bf16.msra.mxu0 0
    %1095 = vmatpush.bf16.msra.mxu0 %v1081
    %1096 = vmatpush.bf16.msra.mxu0 %v1079
    %1097 = vmatpush.bf16.msra.mxu0 %v1077
    %1098 = vmatpush.bf16.msra.mxu0 %v1075
    %1099 = vmatmul.bf16.gmra.mxu0 %v200
    %v1100 = vpop.f32.mrf.mxu0
    %v1101 = vadd.f32 0.0, %v1100
    %v1102 = vpop.f32.mrf.mxu0
    %1103 = vdwg.mxu0
    %1104 = vmatpush.bf16.msra.mxu0 0
    %1105 = vmatpush.bf16.msra.mxu0 0
    %1106 = vmatpush.bf16.msra.mxu0 0
    %1107 = vmatpush.bf16.msra.mxu0 0
    %1108 = vmatpush.bf16.msra.mxu0 %v1082
    %1109 = vmatpush.bf16.msra.mxu0 %v1080
    %1110 = vmatpush.bf16.msra.mxu0 %v1078
    %1111 = vmatpush.bf16.msra.mxu0 %v1076
    %1112 = vmatmul.bf16.gmra.mxu0 %v200
    %v1113 = vpop.f32.mrf.mxu0
    %v1114 = vadd.f32 0.0, %v1113
    %v1115 = vpop.f32.mrf.mxu0
    %1116 = vdwg.mxu0
    %v1117 = vadd.f32 %v1049, %v1101
    %v1118 = vadd.f32 %v1050, %v1114
    %v1119 = vmul.f32 %v1117, 0.5
    %v1120 = vmul.f32 %v1118, 0.5
    %v1121 = vsel %vm67, %v1117, %v1119
    %v1122 = vsel %vm68, %v1118, %v1120
    %v1123 = vtanh.pop %v1121
    %v1124 = vtanh.pop %v1122
    %v1125 = vmul.f32 %v1123, 0.5
    %v1126 = vmul.f32 %v1124, 0.5
    %v1127 = vadd.f32 %v1125, 0.5
    %v1128 = vadd.f32 %v1126, 0.5
    %v1129 = vsel %vm67, %v1123, %v1127
    %v1130 = vsel %vm68, %v1124, %v1128
    %v1131 = vmul.f32 %v1129, 0.0
    %v1132 = vmul.f32 %v1129, %v1130
    %1134 = vrot.lane.b32.xlu0 %v1132, 64
    %v1135 = vpop.permute.xlu0 %1134
    %v1137 = vadd.f32 %v1131, %v1135
    %v1138 = vtanh.pop %v1137
    %v1139 = vmul.f32 %v1130, %v1138
    %1141 = vrot.lane.b32.xlu0 %v1139, 64
    %v1142 = vpop.permute.xlu0 %1141
    %v1144 = vmul.f32 %v261, %v1142
    %v1145 = vadd.f32 %v1144, %v268
    %1147 = vrot.lane.b32.xlu0 %v1137, 64
    %v1148 = vpop.permute.xlu0 %1147
    %v1150 = vmul.f32 %v261, %v1148
    %v1151 = vadd.f32 %v1150, %v268
    %v1152 = vrot.slane %v1027, 2
    %v1153 = vrot.slane %v1041, 2
    %v1156 = vsel %vm71, %v1025, %v1152
    %v1157 = vsel %vm72, %v1039, %v1153
    %v1158 = vpack.c.bf16 %v1145, %v1145
    %v1160 = vsel %vm198, %v1158, 0
    %1162 = vmatpush.bf16.msra.mxu0 0
    %1163 = vmatpush.bf16.msra.mxu0 0
    %1164 = vmatpush.bf16.msra.mxu0 0
    %1165 = vmatpush.bf16.msra.mxu0 0
    %1166 = vmatpush.bf16.msra.mxu0 %v1081
    %1167 = vmatpush.bf16.msra.mxu0 %v1079
    %1168 = vmatpush.bf16.msra.mxu0 %v1077
    %1169 = vmatpush.bf16.msra.mxu0 %v1075
    %1170 = vmatmul.bf16.gmra.mxu0 %v1160
    %v1171 = vpop.f32.mrf.mxu0
    %v1172 = vadd.f32 0.0, %v1171
    %v1173 = vpop.f32.mrf.mxu0
    %1174 = vdwg.mxu0
    %1175 = vmatpush.bf16.msra.mxu0 0
    %1176 = vmatpush.bf16.msra.mxu0 0
    %1177 = vmatpush.bf16.msra.mxu0 0
    %1178 = vmatpush.bf16.msra.mxu0 0
    %1179 = vmatpush.bf16.msra.mxu0 %v1082
    %1180 = vmatpush.bf16.msra.mxu0 %v1080
    %1181 = vmatpush.bf16.msra.mxu0 %v1078
    %1182 = vmatpush.bf16.msra.mxu0 %v1076
    %1183 = vmatmul.bf16.gmra.mxu0 %v1160
    %v1184 = vpop.f32.mrf.mxu0
    %v1185 = vadd.f32 0.0, %v1184
    %v1186 = vpop.f32.mrf.mxu0
    %1187 = vdwg.mxu0
    %v1190 = vrot.slane %v1172, 6
    %v1191 = vrot.slane %v1185, 6
    %v1194 = vadd.f32 %v1156, %v1190
    %v1195 = vadd.f32 %v1157, %v1191
    %v1196 = vmul.f32 %v1194, 0.5
    %v1197 = vmul.f32 %v1195, 0.5
    %v1198 = vsel %vm67, %v1194, %v1196
    %v1199 = vsel %vm68, %v1195, %v1197
    %v1200 = vtanh.pop %v1198
    %v1201 = vtanh.pop %v1199
    %v1202 = vmul.f32 %v1200, 0.5
    %v1203 = vmul.f32 %v1201, 0.5
    %v1204 = vadd.f32 %v1202, 0.5
    %v1205 = vadd.f32 %v1203, 0.5
    %v1206 = vsel %vm67, %v1200, %v1204
    %v1207 = vsel %vm68, %v1201, %v1205
    %v1209 = vrot.slane %v1151, 6
    %1210 = vrot.lane.b32.xlu0 %v1209, 64
    %v1211 = vpop.permute.xlu0 %1210
    %v1213 = vmul.f32 %v1206, %v1211
    %v1214 = vmul.f32 %v1206, %v1207
    %1216 = vrot.lane.b32.xlu0 %v1214, 64
    %v1217 = vpop.permute.xlu0 %1216
    %v1219 = vadd.f32 %v1213, %v1217
    %v1220 = vtanh.pop %v1219
    %v1221 = vmul.f32 %v1207, %v1220
    %v1223 = vrot.slane %v1221, 2
    %1224 = vrot.lane.b32.xlu0 %v1223, 64
    %v1225 = vpop.permute.xlu0 %1224
    %v1227 = vmul.f32 %v364, %v1225
    %v1228 = vmul.f32 %v371, %v1145
    %v1229 = vadd.f32 %v1227, %v1228
    %v1231 = vrot.slane %v1219, 2
    %1232 = vrot.lane.b32.xlu0 %v1231, 64
    %v1233 = vpop.permute.xlu0 %1232
    %v1235 = vmul.f32 %v364, %v1233
    %v1236 = vmul.f32 %v371, %v1151
    %v1237 = vadd.f32 %v1235, %v1236
    %v1238 = vpack.c.bf16 %v1229, %v1229
    %v1240 = vsel %vm198, %v1238, 0
    %1242 = vmatpush.bf16.msra.mxu0 0
    %1243 = vmatpush.bf16.msra.mxu0 0
    %1244 = vmatpush.bf16.msra.mxu0 0
    %1245 = vmatpush.bf16.msra.mxu0 0
    %1246 = vmatpush.bf16.msra.mxu0 %v1081
    %1247 = vmatpush.bf16.msra.mxu0 %v1079
    %1248 = vmatpush.bf16.msra.mxu0 %v1077
    %1249 = vmatpush.bf16.msra.mxu0 %v1075
    %1250 = vmatmul.bf16.gmra.mxu0 %v1240
    %v1251 = vpop.f32.mrf.mxu0
    %v1252 = vadd.f32 0.0, %v1251
    %v1253 = vpop.f32.mrf.mxu0
    %1254 = vdwg.mxu0
    %1255 = vmatpush.bf16.msra.mxu0 0
    %1256 = vmatpush.bf16.msra.mxu0 0
    %1257 = vmatpush.bf16.msra.mxu0 0
    %1258 = vmatpush.bf16.msra.mxu0 0
    %1259 = vmatpush.bf16.msra.mxu0 %v1082
    %1260 = vmatpush.bf16.msra.mxu0 %v1080
    %1261 = vmatpush.bf16.msra.mxu0 %v1078
    %1262 = vmatpush.bf16.msra.mxu0 %v1076
    %1263 = vmatmul.bf16.gmra.mxu0 %v1240
    %v1264 = vpop.f32.mrf.mxu0
    %v1265 = vadd.f32 0.0, %v1264
    %v1266 = vpop.f32.mrf.mxu0
    %1267 = vdwg.mxu0
    %v1270 = vrot.slane %v1252, 4
    %v1271 = vrot.slane %v1265, 4
    %v1274 = vadd.f32 %v1049, %v1270
    %v1275 = vadd.f32 %v1050, %v1271
    %v1276 = vmul.f32 %v1274, 0.5
    %v1277 = vmul.f32 %v1275, 0.5
    %v1278 = vsel %vm67, %v1274, %v1276
    %v1279 = vsel %vm68, %v1275, %v1277
    %v1280 = vtanh.pop %v1278
    %v1281 = vtanh.pop %v1279
    %v1282 = vmul.f32 %v1280, 0.5
    %v1283 = vmul.f32 %v1281, 0.5
    %v1284 = vadd.f32 %v1282, 0.5
    %v1285 = vadd.f32 %v1283, 0.5
    %v1286 = vsel %vm67, %v1280, %v1284
    %v1287 = vsel %vm68, %v1281, %v1285
    %v1289 = vrot.slane %v1237, 4
    %1290 = vrot.lane.b32.xlu0 %v1289, 64
    %v1291 = vpop.permute.xlu0 %1290
    %v1293 = vmul.f32 %v1286, %v1291
    %v1294 = vmul.f32 %v1286, %v1287
    %1296 = vrot.lane.b32.xlu0 %v1294, 64
    %v1297 = vpop.permute.xlu0 %1296
    %v1299 = vadd.f32 %v1293, %v1297
    %v1300 = vtanh.pop %v1299
    %v1301 = vmul.f32 %v1287, %v1300
    %v1303 = vrot.slane %v1301, 4
    %1304 = vrot.lane.b32.xlu0 %v1303, 64
    %v1305 = vpop.permute.xlu0 %1304
    %v1307 = vmul.f32 %v466, %v1305
    %v1308 = vmul.f32 %v473, %v1229
    %v1309 = vadd.f32 %v1307, %v1308
    %v1311 = vrot.slane %v1299, 4
    %1312 = vrot.lane.b32.xlu0 %v1311, 64
    %v1313 = vpop.permute.xlu0 %1312
    %v1315 = vmul.f32 %v466, %v1313
    %v1316 = vmul.f32 %v473, %v1237
    %v1317 = vadd.f32 %v1315, %v1316
    %v1318 = vpack.c.bf16 %v1309, %v1309
    %v1320 = vsel %vm198, %v1318, 0
    %1322 = vmatpush.bf16.msra.mxu0 0
    %1323 = vmatpush.bf16.msra.mxu0 0
    %1324 = vmatpush.bf16.msra.mxu0 0
    %1325 = vmatpush.bf16.msra.mxu0 0
    %1326 = vmatpush.bf16.msra.mxu0 %v1081
    %1327 = vmatpush.bf16.msra.mxu0 %v1079
    %1328 = vmatpush.bf16.msra.mxu0 %v1077
    %1329 = vmatpush.bf16.msra.mxu0 %v1075
    %1330 = vmatmul.bf16.gmra.mxu0 %v1320
    %v1331 = vpop.f32.mrf.mxu0
    %v1332 = vadd.f32 0.0, %v1331
    %v1333 = vpop.f32.mrf.mxu0
    %1334 = vdwg.mxu0
    %1335 = vmatpush.bf16.msra.mxu0 0
    %1336 = vmatpush.bf16.msra.mxu0 0
    %1337 = vmatpush.bf16.msra.mxu0 0
    %1338 = vmatpush.bf16.msra.mxu0 0
    %1339 = vmatpush.bf16.msra.mxu0 %v1082
    %1340 = vmatpush.bf16.msra.mxu0 %v1080
    %1341 = vmatpush.bf16.msra.mxu0 %v1078
    %1342 = vmatpush.bf16.msra.mxu0 %v1076
    %1343 = vmatmul.bf16.gmra.mxu0 %v1320
    %v1344 = vpop.f32.mrf.mxu0
    %v1345 = vadd.f32 0.0, %v1344
    %v1346 = vpop.f32.mrf.mxu0
    %1347 = vdwg.mxu0
    %v1350 = vrot.slane %v1332, 2
    %v1351 = vrot.slane %v1345, 2
    %v1354 = vadd.f32 %v1156, %v1350
    %v1355 = vadd.f32 %v1157, %v1351
    %v1356 = vmul.f32 %v1354, 0.5
    %v1357 = vmul.f32 %v1355, 0.5
    %v1358 = vsel %vm67, %v1354, %v1356
    %v1359 = vsel %vm68, %v1355, %v1357
    %v1360 = vtanh.pop %v1358
    %v1361 = vtanh.pop %v1359
    %v1362 = vmul.f32 %v1360, 0.5
    %v1363 = vmul.f32 %v1361, 0.5
    %v1364 = vadd.f32 %v1362, 0.5
    %v1365 = vadd.f32 %v1363, 0.5
    %v1366 = vsel %vm67, %v1360, %v1364
    %v1367 = vsel %vm68, %v1361, %v1365
    %v1369 = vrot.slane %v1317, 2
    %1370 = vrot.lane.b32.xlu0 %v1369, 64
    %v1371 = vpop.permute.xlu0 %1370
    %v1373 = vmul.f32 %v1366, %v1371
    %v1374 = vmul.f32 %v1366, %v1367
    %1376 = vrot.lane.b32.xlu0 %v1374, 64
    %v1377 = vpop.permute.xlu0 %1376
    %v1379 = vadd.f32 %v1373, %v1377
    %v1380 = vtanh.pop %v1379
    %v1381 = vmul.f32 %v1367, %v1380
    %v1383 = vrot.slane %v1381, 6
    %1384 = vrot.lane.b32.xlu0 %v1383, 64
    %v1385 = vpop.permute.xlu0 %1384
    %v1387 = vmul.f32 %v568, %v1385
    %v1388 = vmul.f32 %v575, %v1309
    %v1389 = vadd.f32 %v1387, %v1388
    %v1391 = vrot.slane %v1379, 6
    %1392 = vrot.lane.b32.xlu0 %v1391, 64
    %v1393 = vpop.permute.xlu0 %1392
    %v1395 = vmul.f32 %v568, %v1393
    %v1396 = vmul.f32 %v575, %v1317
    %v1397 = vadd.f32 %v1395, %v1396
    %v1400 = vrot.slane %v1025, 6
    %v1401 = vrot.slane %v1039, 6
    %v1404 = vsel %vm71, %v1027, %v1400
    %v1405 = vsel %vm72, %v1041, %v1401
    %v1406 = vpack.c.bf16 %v1389, %v1389
    %v1408 = vsel %vm198, %v1406, 0
    %1410 = vmatpush.bf16.msra.mxu0 0
    %1411 = vmatpush.bf16.msra.mxu0 0
    %1412 = vmatpush.bf16.msra.mxu0 0
    %1413 = vmatpush.bf16.msra.mxu0 0
    %1414 = vmatpush.bf16.msra.mxu0 %v1081
    %1415 = vmatpush.bf16.msra.mxu0 %v1079
    %1416 = vmatpush.bf16.msra.mxu0 %v1077
    %1417 = vmatpush.bf16.msra.mxu0 %v1075
    %1418 = vmatmul.bf16.gmra.mxu0 %v1408
    %v1419 = vpop.f32.mrf.mxu0
    %v1420 = vadd.f32 0.0, %v1419
    %v1421 = vpop.f32.mrf.mxu0
    %1422 = vdwg.mxu0
    %1423 = vmatpush.bf16.msra.mxu0 0
    %1424 = vmatpush.bf16.msra.mxu0 0
    %1425 = vmatpush.bf16.msra.mxu0 0
    %1426 = vmatpush.bf16.msra.mxu0 0
    %1427 = vmatpush.bf16.msra.mxu0 %v1082
    %1428 = vmatpush.bf16.msra.mxu0 %v1080
    %1429 = vmatpush.bf16.msra.mxu0 %v1078
    %1430 = vmatpush.bf16.msra.mxu0 %v1076
    %1431 = vmatmul.bf16.gmra.mxu0 %v1408
    %v1432 = vpop.f32.mrf.mxu0
    %v1433 = vadd.f32 0.0, %v1432
    %v1434 = vpop.f32.mrf.mxu0
    %1435 = vdwg.mxu0
    %v1436 = vadd.f32 %v1404, %v1420
    %v1437 = vadd.f32 %v1405, %v1433
    %v1438 = vmul.f32 %v1436, 0.5
    %v1439 = vmul.f32 %v1437, 0.5
    %v1440 = vsel %vm67, %v1436, %v1438
    %v1441 = vsel %vm68, %v1437, %v1439
    %v1442 = vtanh.pop %v1440
    %v1443 = vtanh.pop %v1441
    %v1444 = vmul.f32 %v1442, 0.5
    %v1445 = vmul.f32 %v1443, 0.5
    %v1446 = vadd.f32 %v1444, 0.5
    %v1447 = vadd.f32 %v1445, 0.5
    %v1448 = vsel %vm67, %v1442, %v1446
    %v1449 = vsel %vm68, %v1443, %v1447
    %1451 = vrot.lane.b32.xlu0 %v1397, 64
    %v1452 = vpop.permute.xlu0 %1451
    %v1454 = vmul.f32 %v1448, %v1452
    %v1455 = vmul.f32 %v1448, %v1449
    %1457 = vrot.lane.b32.xlu0 %v1455, 64
    %v1458 = vpop.permute.xlu0 %1457
    %v1460 = vadd.f32 %v1454, %v1458
    %v1461 = vtanh.pop %v1460
    %v1462 = vmul.f32 %v1449, %v1461
    %1464 = vrot.lane.b32.xlu0 %v1462, 64
    %v1465 = vpop.permute.xlu0 %1464
    %v1467 = vmul.f32 %v659, %v1465
    %v1468 = vmul.f32 %v665, %v1389
    %v1469 = vadd.f32 %v1467, %v1468
    %1471 = vrot.lane.b32.xlu0 %v1460, 64
    %v1472 = vpop.permute.xlu0 %1471
    %v1474 = vmul.f32 %v659, %v1472
    %v1475 = vmul.f32 %v665, %v1397
    %v1476 = vadd.f32 %v1474, %v1475
    %v1477 = vrot.slane %v1025, 2
    %v1478 = vrot.slane %v1039, 2
    %v1481 = vsel %vm71, %v1027, %v1477
    %v1482 = vsel %vm72, %v1041, %v1478
    %v1483 = vpack.c.bf16 %v1469, %v1469
    %v1485 = vsel %vm198, %v1483, 0
    %1487 = vmatpush.bf16.msra.mxu0 0
    %1488 = vmatpush.bf16.msra.mxu0 0
    %1489 = vmatpush.bf16.msra.mxu0 0
    %1490 = vmatpush.bf16.msra.mxu0 0
    %1491 = vmatpush.bf16.msra.mxu0 %v1081
    %1492 = vmatpush.bf16.msra.mxu0 %v1079
    %1493 = vmatpush.bf16.msra.mxu0 %v1077
    %1494 = vmatpush.bf16.msra.mxu0 %v1075
    %1495 = vmatmul.bf16.gmra.mxu0 %v1485
    %v1496 = vpop.f32.mrf.mxu0
    %v1497 = vadd.f32 0.0, %v1496
    %v1498 = vpop.f32.mrf.mxu0
    %1499 = vdwg.mxu0
    %1500 = vmatpush.bf16.msra.mxu0 0
    %1501 = vmatpush.bf16.msra.mxu0 0
    %1502 = vmatpush.bf16.msra.mxu0 0
    %1503 = vmatpush.bf16.msra.mxu0 0
    %1504 = vmatpush.bf16.msra.mxu0 %v1082
    %1505 = vmatpush.bf16.msra.mxu0 %v1080
    %1506 = vmatpush.bf16.msra.mxu0 %v1078
    %1507 = vmatpush.bf16.msra.mxu0 %v1076
    %1508 = vmatmul.bf16.gmra.mxu0 %v1485
    %v1509 = vpop.f32.mrf.mxu0
    %v1510 = vadd.f32 0.0, %v1509
    %v1511 = vpop.f32.mrf.mxu0
    %1512 = vdwg.mxu0
    %v1515 = vrot.slane %v1497, 6
    %v1516 = vrot.slane %v1510, 6
    %v1519 = vadd.f32 %v1481, %v1515
    %v1520 = vadd.f32 %v1482, %v1516
    %v1521 = vmul.f32 %v1519, 0.5
    %v1522 = vmul.f32 %v1520, 0.5
    %v1523 = vsel %vm67, %v1519, %v1521
    %v1524 = vsel %vm68, %v1520, %v1522
    %v1525 = vtanh.pop %v1523
    %v1526 = vtanh.pop %v1524
    %v1527 = vmul.f32 %v1525, 0.5
    %v1528 = vmul.f32 %v1526, 0.5
    %v1529 = vadd.f32 %v1527, 0.5
    %v1530 = vadd.f32 %v1528, 0.5
    %v1531 = vsel %vm67, %v1525, %v1529
    %v1532 = vsel %vm68, %v1526, %v1530
    %v1534 = vrot.slane %v1476, 6
    %1535 = vrot.lane.b32.xlu0 %v1534, 64
    %v1536 = vpop.permute.xlu0 %1535
    %v1538 = vmul.f32 %v1531, %v1536
    %v1539 = vmul.f32 %v1531, %v1532
    %1541 = vrot.lane.b32.xlu0 %v1539, 64
    %v1542 = vpop.permute.xlu0 %1541
    %v1544 = vadd.f32 %v1538, %v1542
    %v1545 = vtanh.pop %v1544
    %v1546 = vmul.f32 %v1532, %v1545
    %v1548 = vrot.slane %v1546, 2
    %1549 = vrot.lane.b32.xlu0 %v1548, 64
    %v1550 = vpop.permute.xlu0 %1549
    %v1552 = vmul.f32 %v751, %v1550
    %v1553 = vmul.f32 %v758, %v1469
    %v1554 = vadd.f32 %v1552, %v1553
    %v1556 = vrot.slane %v1544, 2
    %1557 = vrot.lane.b32.xlu0 %v1556, 64
    %v1558 = vpop.permute.xlu0 %1557
    %v1560 = vmul.f32 %v751, %v1558
    %v1561 = vmul.f32 %v758, %v1476
    %v1562 = vadd.f32 %v1560, %v1561
    %v1563 = vpack.c.bf16 %v1554, %v1554
    %v1565 = vsel %vm198, %v1563, 0
    %1567 = vmatpush.bf16.msra.mxu0 0
    %1568 = vmatpush.bf16.msra.mxu0 0
    %1569 = vmatpush.bf16.msra.mxu0 0
    %1570 = vmatpush.bf16.msra.mxu0 0
    %1571 = vmatpush.bf16.msra.mxu0 %v1081
    %1572 = vmatpush.bf16.msra.mxu0 %v1079
    %1573 = vmatpush.bf16.msra.mxu0 %v1077
    %1574 = vmatpush.bf16.msra.mxu0 %v1075
    %1575 = vmatmul.bf16.gmra.mxu0 %v1565
    %v1576 = vpop.f32.mrf.mxu0
    %v1577 = vadd.f32 0.0, %v1576
    %v1578 = vpop.f32.mrf.mxu0
    %1579 = vdwg.mxu0
    %1580 = vmatpush.bf16.msra.mxu0 0
    %1581 = vmatpush.bf16.msra.mxu0 0
    %1582 = vmatpush.bf16.msra.mxu0 0
    %1583 = vmatpush.bf16.msra.mxu0 0
    %1584 = vmatpush.bf16.msra.mxu0 %v1082
    %1585 = vmatpush.bf16.msra.mxu0 %v1080
    %1586 = vmatpush.bf16.msra.mxu0 %v1078
    %1587 = vmatpush.bf16.msra.mxu0 %v1076
    %1588 = vmatmul.bf16.gmra.mxu0 %v1565
    %v1589 = vpop.f32.mrf.mxu0
    %v1590 = vadd.f32 0.0, %v1589
    %v1591 = vpop.f32.mrf.mxu0
    %1592 = vdwg.mxu0
    %v1595 = vrot.slane %v1577, 4
    %v1596 = vrot.slane %v1590, 4
    %v1599 = vadd.f32 %v1404, %v1595
    %v1600 = vadd.f32 %v1405, %v1596
    %v1601 = vmul.f32 %v1599, 0.5
    %v1602 = vmul.f32 %v1600, 0.5
    %v1603 = vsel %vm67, %v1599, %v1601
    %v1604 = vsel %vm68, %v1600, %v1602
    %v1605 = vtanh.pop %v1603
    %v1606 = vtanh.pop %v1604
    %v1607 = vmul.f32 %v1605, 0.5
    %v1608 = vmul.f32 %v1606, 0.5
    %v1609 = vadd.f32 %v1607, 0.5
    %v1610 = vadd.f32 %v1608, 0.5
    %v1611 = vsel %vm67, %v1605, %v1609
    %v1612 = vsel %vm68, %v1606, %v1610
    %v1614 = vrot.slane %v1562, 4
    %1615 = vrot.lane.b32.xlu0 %v1614, 64
    %v1616 = vpop.permute.xlu0 %1615
    %v1618 = vmul.f32 %v1611, %v1616
    %v1619 = vmul.f32 %v1611, %v1612
    %1621 = vrot.lane.b32.xlu0 %v1619, 64
    %v1622 = vpop.permute.xlu0 %1621
    %v1624 = vadd.f32 %v1618, %v1622
    %v1625 = vtanh.pop %v1624
    %v1626 = vmul.f32 %v1612, %v1625
    %v1628 = vrot.slane %v1626, 4
    %1629 = vrot.lane.b32.xlu0 %v1628, 64
    %v1630 = vpop.permute.xlu0 %1629
    %v1632 = vmul.f32 %v841, %v1630
    %v1633 = vmul.f32 %v848, %v1554
    %v1634 = vadd.f32 %v1632, %v1633
    %v1636 = vrot.slane %v1624, 4
    %1637 = vrot.lane.b32.xlu0 %v1636, 64
    %v1638 = vpop.permute.xlu0 %1637
    %v1640 = vmul.f32 %v841, %v1638
    %v1641 = vmul.f32 %v848, %v1562
    %v1642 = vadd.f32 %v1640, %v1641
    %v1643 = vpack.c.bf16 %v1634, %v1634
    %v1645 = vsel %vm198, %v1643, 0
    %1647 = vmatpush.bf16.msra.mxu0 0
    %1648 = vmatpush.bf16.msra.mxu0 0
    %1649 = vmatpush.bf16.msra.mxu0 0
    %1650 = vmatpush.bf16.msra.mxu0 0
    %1651 = vmatpush.bf16.msra.mxu0 %v1081
    %1652 = vmatpush.bf16.msra.mxu0 %v1079
    %1653 = vmatpush.bf16.msra.mxu0 %v1077
    %1654 = vmatpush.bf16.msra.mxu0 %v1075
    %1655 = vmatmul.bf16.gmra.mxu0 %v1645
    %v1656 = vpop.f32.mrf.mxu0
    %v1657 = vadd.f32 0.0, %v1656
    %v1658 = vpop.f32.mrf.mxu0
    %1659 = vdwg.mxu0
    %1660 = vmatpush.bf16.msra.mxu0 0
    %1661 = vmatpush.bf16.msra.mxu0 0
    %1662 = vmatpush.bf16.msra.mxu0 0
    %1663 = vmatpush.bf16.msra.mxu0 0
    %1664 = vmatpush.bf16.msra.mxu0 %v1082
    %1665 = vmatpush.bf16.msra.mxu0 %v1080
    %1666 = vmatpush.bf16.msra.mxu0 %v1078
    %1667 = vmatpush.bf16.msra.mxu0 %v1076
    %1668 = vmatmul.bf16.gmra.mxu0 %v1645
    %v1669 = vpop.f32.mrf.mxu0
    %v1670 = vadd.f32 0.0, %v1669
    %v1671 = vpop.f32.mrf.mxu0
    %1672 = vdwg.mxu0
    %v1675 = vrot.slane %v1657, 2
    %v1676 = vrot.slane %v1670, 2
    %v1679 = vadd.f32 %v1481, %v1675
    %v1680 = vadd.f32 %v1482, %v1676
    %v1681 = vmul.f32 %v1679, 0.5
    %v1682 = vmul.f32 %v1680, 0.5
    %v1683 = vsel %vm67, %v1679, %v1681
    %v1684 = vsel %vm68, %v1680, %v1682
    %v1685 = vtanh.pop %v1683
    %v1686 = vtanh.pop %v1684
    %v1687 = vmul.f32 %v1685, 0.5
    %v1688 = vmul.f32 %v1686, 0.5
    %v1689 = vadd.f32 %v1687, 0.5
    %v1690 = vadd.f32 %v1688, 0.5
    %v1691 = vsel %vm67, %v1685, %v1689
    %v1692 = vsel %vm68, %v1686, %v1690
    %v1694 = vrot.slane %v1642, 2
    %1695 = vrot.lane.b32.xlu0 %v1694, 64
    %v1696 = vpop.permute.xlu0 %1695
    %v1698 = vmul.f32 %v1691, %v1696
    %v1699 = vmul.f32 %v1691, %v1692
    %1701 = vrot.lane.b32.xlu0 %v1699, 64
    %v1702 = vpop.permute.xlu0 %1701
    %v1704 = vadd.f32 %v1698, %v1702
    %v1705 = vtanh.pop %v1704
    %v1706 = vmul.f32 %v1692, %v1705
    %v1708 = vrot.slane %v1706, 6
    %1709 = vrot.lane.b32.xlu0 %v1708, 64
    %v1710 = vpop.permute.xlu0 %1709
    %v1712 = vmul.f32 %v931, %v1710
    %v1713 = vsel %vm73, %v1712, %v1144
    %v1714 = vmax.f32 %v1713, 0.0
    %v1715 = vld [vmem:[%s3] sm:$0xff]
    %v1716 = vld [vmem:[%s3 + $0x8] sm:$0xff]
    %v1717 = vld [vmem:[%s3 + $0x10] sm:$0xff]
    %v1718 = vld [vmem:[%s3 + $0x18] sm:$0xff]
    %v1719 = vld [vmem:[%s3 + $0x20] sm:$0xff]
    %v1720 = vld [vmem:[%s3 + $0x28] sm:$0xff]
    %v1721 = vld [vmem:[%s3 + $0x30] sm:$0xff]
    %v1722 = vld [vmem:[%s3 + $0x38] sm:$0xff]
    %v1723 = vld [vmem:[%s3 + $0x40] sm:$0x1]
    %v1724 = vperm.slane %v1723, 0
    %v1726 = vsel %vm198, %v1714, 0
    %1728 = vmatpush.msra.mxu0 0.0
    %1729 = vmatpush.msra.mxu0 0.0
    %1730 = vmatpush.msra.mxu0 0.0
    %1731 = vmatpush.msra.mxu0 0.0
    %1732 = vmatpush.msra.mxu0 0.0
    %1733 = vmatpush.msra.mxu0 0.0
    %1734 = vmatpush.msra.mxu0 0.0
    %1735 = vmatpush.msra.mxu0 0.0
    %1736 = vmatpush.msra.mxu0 %v1722
    %1737 = vmatpush.msra.mxu0 %v1721
    %1738 = vmatpush.msra.mxu0 %v1720
    %1739 = vmatpush.msra.mxu0 %v1719
    %1740 = vmatpush.msra.mxu0 %v1718
    %1741 = vmatpush.msra.mxu0 %v1717
    %1742 = vmatpush.msra.mxu0 %v1716
    %1743 = vmatpush.msra.mxu0 %v1715
    %1744 = vmatmul.f32.gmra.mxu0 %v1726
    %v1745 = vpop.f32.mrf.mxu0
    %v1746 = vadd.f32 %v1724, %v1745
    %1747 = vdwg.mxu0
    %vm1748 = vcmask 33792
    %1749 = vst.msk [vmem:[#allocation6] sm:$0x3] %vm1748, %v1746
    // Predicated region
    $region22: #{tpu_custom_call.1} parent=1 // pred_check
      _
    $region23: #{tpu_custom_call.1} parent=1 // pred_check_branch
      %1751 = sbr.rel (0) target = $region25
    $region24: #{tpu_custom_call.1} parent=1 // pred_region
      %1753 = vsyncadd [#allocation5], 0
      %s1755 = sshll.u32 [#allocation6], 4
      %s1756 = int_to_ptr.vmem [resolvable:$true] %s1755
      %s1757 = sshll.u32 %s4, 4
      %s1758 = int_to_ptr.hbm [resolvable:$true] %s1757
      %1760 = dma.vmem_to_hbm [thread:$0]  %s1756, 32, %s1758, [#allocation5]
    $region25: #{tpu_custom_call.1} parent=1 // pred_fallthru
      _
    // Predicated region
    $region26: #{tpu_custom_call.1} parent=1 // pred_check
      _
    $region27: #{tpu_custom_call.1} parent=1 // pred_check_branch
      %1762 = sbr.rel (0) target = $region29
    $region28: #{tpu_custom_call.1} parent=1 // pred_region
      %1764 = dma.done [#allocation5], 32
    $region29: #{tpu_custom_call.1} parent=1 // pred_fallthru
      _
    %1765 = vsyncpa [#allocation4], 1
    %1766 = vsyncpa [#allocation5], 1

</llo_original>
